<compile_context>
chip_gen: v6e
topology: v6e:2x2x1
jax: 0.10.0
libtpu: 0.0.40
codegen_flags: <defaults>
</compile_context>

<pallas_src>
import numpy as np
import jax
import jax.numpy as jnp
from jax.experimental import pallas as pl
from jax.experimental.pallas import tpu as pltpu


# ----------------------------------------------------------------------------
# Kernel: one batch tile of MT = bt*J rows, everything kept 2-D.
# ----------------------------------------------------------------------------
def _res_graph_conv_kernel(x_ref,
                           d1_ref, a1_ref, w1_ref, t1_ref,
                           d2_ref, a2_ref, w2_ref, t2_ref,
                           o_ref):
    x_in = x_ref[...]                               # (MT, Cin), streamed dtype (bf16)
    x_res = x_in.astype(jnp.float32)                # residual kept in f32
    xb = x_in.astype(jnp.bfloat16)                  # MXU operand (no-op if already bf16)

    H = t1_ref.shape[-1]
    C = t2_ref.shape[-1]

    # ---- _GraphConv #1 : SemGraphConv -> folded BN(eval) -> ReLU ----
    h = jnp.dot(xb, w1_ref[...], preferred_element_type=jnp.float32)     # (MT, 2H)
    y = (d1_ref[...] * h[:, :H]                                          # diag part (VPU)
         + jnp.dot(a1_ref[...], h[:, H:].astype(jnp.bfloat16),           # off-diag (MXU)
                   preferred_element_type=jnp.float32)
         + t1_ref[...])                                                  # folded bias+BN
    y = jnp.maximum(y, 0.0)

    # ---- _GraphConv #2 ----
    g = jnp.dot(y.astype(jnp.bfloat16), w2_ref[...],
                preferred_element_type=jnp.float32)                      # (MT, 2C)
    z = (d2_ref[...] * g[:, :C]
         + jnp.dot(a2_ref[...], g[:, C:].astype(jnp.bfloat16),
                   preferred_element_type=jnp.float32)
         + t2_ref[...])
    z = jnp.maximum(z, 0.0)

    # ---- residual add (f32) -> output dtype ----
    o_ref[...] = (x_res + z).astype(o_ref.dtype)


# ----------------------------------------------------------------------------
# One-time operand preparation (hoisted out of the call path).
# ----------------------------------------------------------------------------
def pick_bt(B, J, *, rows_per_tile=256, min_grid_steps=4):
    """Batch-tile size: ~256 rows per step, but keep >= min_grid_steps grid
    steps so both v7x TensorCores get >= 2 pipelined steps each."""
    bt = max(1, min(rows_per_tile // J, B))
    while bt > 1 and pl.cdiv(B, bt) < min_grid_steps:
        bt = max(1, bt // 2)
    while (bt * J) % 8 != 0:          # keep the sublane dim a multiple of 8
        bt += 1
    return bt


def prepare_operands(fused, *, bt):
    """Build all grid-invariant kernel operands ONCE for a given tile size."""
    J = fused["a1"].shape[0]
    eye_bt = jnp.eye(bt, dtype=jnp.float32)
    return {
        "bt": bt, "J": J,
        "d1": jnp.tile(fused["d1"].reshape(J, 1), (bt, 1)),              # (MT, 1) f32
        "d2": jnp.tile(fused["d2"].reshape(J, 1), (bt, 1)),
        "a1": jnp.kron(eye_bt, fused["a1"]).astype(jnp.bfloat16),        # (MT, MT) bf16
        "a2": jnp.kron(eye_bt, fused["a2"]).astype(jnp.bfloat16),
        "w1": fused["w1"].astype(jnp.bfloat16),                          # (Cin, 2H) bf16
        "w2": fused["w2"].astype(jnp.bfloat16),                          # (H, 2Cout) bf16
        "t1": fused["t1"],                                               # (1, H)   f32
        "t2": fused["t2"],                                               # (1, Cout) f32
    }


# ----------------------------------------------------------------------------
# Per-call wrapper: (optional pad) + reshape + pallas_call.
# ----------------------------------------------------------------------------
def res_graph_conv(x, prep):
    """x: (B, J, Cin) (bf16 recommended).  prep: prepare_operands() output."""
    B, J, Cin = x.shape
    assert J == prep["J"]
    bt = prep["bt"]
    H = prep["t1"].shape[-1]
    Cout = prep["t2"].shape[-1]
    assert Cout == Cin, "residual connection requires input_dim == output_dim"

    grid = pl.cdiv(B, bt)
    Bp = grid * bt
    xp = x if Bp == B else jnp.pad(x, ((0, Bp - B), (0, 0), (0, 0)))
    MT = bt * J
    x2 = xp.reshape(Bp * J, Cin)                     # bitcast, no data movement

    const = lambda *shape: pl.BlockSpec(shape, lambda i: tuple(0 for _ in shape))

    # Advisory cost for XLA's scheduler around this microsecond-scale call.
    flops = grid * (2 * MT * Cin * 2 * H + 2 * MT * MT * H
                    + 2 * MT * H * 2 * Cout + 2 * MT * MT * Cout)
    const_bytes = sum(int(prep[k].nbytes)
                      for k in ("d1", "a1", "w1", "t1", "d2", "a2", "w2", "t2"))
    bytes_accessed = (grid * MT * (Cin * x2.dtype.itemsize + Cout * x.dtype.itemsize)
                      + const_bytes)

    out2 = pl.pallas_call(
        _res_graph_conv_kernel,
        out_shape=jax.ShapeDtypeStruct((Bp * J, Cout), x.dtype),
        grid=(grid,),
        in_specs=[
            pl.BlockSpec((MT, Cin), lambda i: (i, 0)),   # x tile (bt samples)
            const(MT, 1), const(MT, MT),                 # layer-1 adj diag / block-offdiag
            const(Cin, 2 * H), const(1, H),              # layer-1 fused weight / shift
            const(MT, 1), const(MT, MT),                 # layer-2 adj diag / block-offdiag
            const(H, 2 * Cout), const(1, Cout),          # layer-2 fused weight / shift
        ],
        out_specs=pl.BlockSpec((MT, Cout), lambda i: (i, 0)),
        compiler_params=pltpu.CompilerParams(
            dimension_semantics=("parallel",)),
        cost_estimate=pl.CostEstimate(flops=flops, transcendentals=0,
                                      bytes_accessed=bytes_accessed),
    )(x2, prep["d1"], prep["a1"], prep["w1"], prep["t1"],
      prep["d2"], prep["a2"], prep["w2"], prep["t2"])

    return out2.reshape(Bp, J, Cout)[:B]


# ----------------------------- parameter setup (plain JAX glue) -------------
def build_adjacency(J):
    """Simple symmetric chain skeleton with self loops (adj > 0 mask)."""
    a = np.eye(J, dtype=np.float32)
    for i in range(J - 1):
        a[i, i + 1] = 1.0
        a[i + 1, i] = 1.0
    return a


def make_raw_params(key, adj_np, in_dim, hid_dim, out_dim):
    """Parameters mirroring the PyTorch module (eval mode, fresh BN stats)."""
    J = adj_np.shape[0]
    mask = adj_np > 0
    idx = np.argwhere(mask)
    nnz = idx.shape[0]
    ks = jax.random.split(key, 12)

    def xavier(k, shape):
        lim = 1.414 * np.sqrt(6.0 / (shape[0] + shape[1]))
        return jax.random.uniform(k, shape, jnp.float32, -lim, lim)

    def soft_adj(k):
        # SemGraphConv learnable edge weights `e`, softmaxed over dim=1.
        e = jax.random.normal(k, (nnz,), jnp.float32) * 0.1 + 1.0
        dense = jnp.full((J, J), -9e15, jnp.float32)
        dense = dense.at[idx[:, 0], idx[:, 1]].set(e)
        return jax.nn.softmax(dense, axis=1)

    def bn(kg, kb, dim):
        gamma = 1.0 + 0.1 * jax.random.normal(kg, (dim,), jnp.float32)
        beta = 0.1 * jax.random.normal(kb, (dim,), jnp.float32)
        mean = jnp.zeros((dim,), jnp.float32)     # fresh running stats (eval)
        var = jnp.ones((dim,), jnp.float32)
        return gamma, beta, mean, var

    s1 = 1.0 / np.sqrt(hid_dim)
    s2 = 1.0 / np.sqrt(out_dim)
    return {
        "adj1": soft_adj(ks[0]), "adj2": soft_adj(ks[1]),
        "w10": xavier(ks[2], (in_dim, hid_dim)),
        "w11": xavier(ks[3], (in_dim, hid_dim)),
        "b1": jax.random.uniform(ks[4], (hid_dim,), jnp.float32, -s1, s1),
        "bn1": bn(ks[5], ks[6], hid_dim),
        "w20": xavier(ks[7], (hid_dim, out_dim)),
        "w21": xavier(ks[8], (hid_dim, out_dim)),
        "b2": jax.random.uniform(ks[9], (out_dim,), jnp.float32, -s2, s2),
        "bn2": bn(ks[10], ks[11], out_dim),
    }


def fold_params(raw, eps=1e-5):
    """Fold BN(eval) scale into weight columns and bias+shift into one vector."""
    def fold_layer(w0, w1, b, bn):
        gamma, beta, mean, var = bn
        s = gamma / jnp.sqrt(var + eps)
        t = beta - mean * s
        wcat = jnp.concatenate([w0 * s, w1 * s], axis=1)     # (Cin, 2H)
        return wcat, (b * s + t)[None, :]                    # (1, H)
    w1, t1 = fold_layer(raw["w10"], raw["w11"], raw["b1"], raw["bn1"])
    w2, t2 = fold_layer(raw["w20"], raw["w21"], raw["b2"], raw["bn2"])
    J = raw["adj1"].shape[0]
    eye = jnp.eye(J, dtype=jnp.float32)
    return {
        "w1": w1, "t1": t1, "w2": w2, "t2": t2,
        "d1": jnp.diagonal(raw["adj1"]),          # softmax(adj) * I   (diagonal)
        "a1": raw["adj1"] * (1.0 - eye),          # softmax(adj) * (1 - I)
        "d2": jnp.diagonal(raw["adj2"]),
        "a2": raw["adj2"] * (1.0 - eye),
    }


# ----------------------------- references -----------------------------------
def reference_module(x, raw, eps=1e-5):
    """Module-faithful f32 reference of _ResGraphConv.forward (eval mode)."""
    def gconv(xx, adj, w0, w1, b, bn):
        J = adj.shape[0]
        eye = jnp.eye(J, dtype=jnp.float32)
        h0 = jnp.einsum("bjc,cd->bjd", xx, w0)
        h1 = jnp.einsum("bjc,cd->bjd", xx, w1)
        y = (jnp.einsum("jk,bkd->bjd", adj * eye, h0)
             + jnp.einsum("jk,bkd->bjd", adj * (1.0 - eye), h1) + b)
        gamma, beta, mean, var = bn
        y = (y - mean) / jnp.sqrt(var + eps) * gamma + beta   # BatchNorm1d eval
        return jnp.maximum(y, 0.0)                            # ReLU (dropout = id)
    out = gconv(x, raw["adj1"], raw["w10"], raw["w11"], raw["b1"], raw["bn1"])
    out = gconv(out, raw["adj2"], raw["w20"], raw["w21"], raw["b2"], raw["bn2"])
    return x + out


def reference_fused(x, fused):
    """Plain-JAX mirror of the kernel's folded/bf16 math (tight check)."""
    def layer(xx, w, t, d, a):
        H = t.shape[-1]
        h = jnp.einsum("bjc,ch->bjh", xx.astype(jnp.bfloat16),
                       w.astype(jnp.bfloat16), preferred_element_type=jnp.float32)
        off = jnp.einsum("jk,bkh->bjh", a.astype(jnp.bfloat16),
                         h[..., H:].astype(jnp.bfloat16),
                         preferred_element_type=jnp.float32)
        y = d[None, :, None] * h[..., :H] + off + t
        return jnp.maximum(y, 0.0)
    xb = x.astype(jnp.bfloat16)
    y = layer(xb, fused["w1"], fused["t1"], fused["d1"], fused["a1"])
    z = layer(y, fused["w2"], fused["t2"], fused["d2"], fused["a2"])
    return (xb.astype(jnp.float32) + z).astype(x.dtype)


# ----------------------------------------------------------------------------
if __name__ == "__main__":
    B, J = 64, 16                       # batch, joints (SemGCN skeleton)
    IN_DIM = HID_DIM = OUT_DIM = 128    # residual requires in == out

    key = jax.random.PRNGKey(0)
    kx, kp = jax.random.split(key)
    x_f32 = jax.random.normal(kx, (B, J, IN_DIM), jnp.float32)
    x_bf16 = x_f32.astype(jnp.bfloat16)          # stream activations in bf16

    adj_np = build_adjacency(J)
    raw = make_raw_params(kp, adj_np, IN_DIM, HID_DIM, OUT_DIM)
    fused = fold_params(raw)

    # One-time prep (hoisted out of the per-call path).
    bt = pick_bt(B, J, rows_per_tile=256, min_grid_steps=4)   # bt=16 -> MT=256, grid=4
    prep = prepare_operands(fused, bt=bt)

    run = jax.jit(lambda xx: res_graph_conv(xx, prep))
    out = jax.block_until_ready(run(x_bf16))
    assert out.shape == (B, J, OUT_DIM)
    out_f32 = np.asarray(out, dtype=np.float32)

    # Tight check vs. a precision-matched (bf16 in/out, bf16-matmul) reference.
    ref_tight = jax.block_until_ready(reference_fused(x_bf16, fused))
    np.testing.assert_allclose(out_f32, np.asarray(ref_tight, dtype=np.float32),
                               rtol=1e-2, atol=1e-2)

    # Fidelity check vs. the f32 module-faithful reference (bf16-sized tol).
    ref_module = jax.block_until_ready(reference_module(x_f32, raw))
    np.testing.assert_allclose(out_f32, np.asarray(ref_module),
                               rtol=5e-2, atol=5e-2)
    print("KERNEL_OK")
</pallas_src>

<mosaic_0001>
module attributes {stable_mosaic.version = 11 : i64} {
  func.func @_res_graph_conv_kernel(%arg0: i32, %arg1: memref<256x128xbf16, #tpu.memory_space<vmem>>, %arg2: memref<256x1xf32, #tpu.memory_space<vmem>>, %arg3: memref<256x256xbf16, #tpu.memory_space<vmem>>, %arg4: memref<128x256xbf16, #tpu.memory_space<vmem>>, %arg5: memref<1x128xf32, #tpu.memory_space<vmem>>, %arg6: memref<256x1xf32, #tpu.memory_space<vmem>>, %arg7: memref<256x256xbf16, #tpu.memory_space<vmem>>, %arg8: memref<128x256xbf16, #tpu.memory_space<vmem>>, %arg9: memref<1x128xf32, #tpu.memory_space<vmem>>, %arg10: memref<256x128xbf16, #tpu.memory_space<vmem>>) attributes {dimension_semantics = [#tpu.dimension_semantics<parallel>], iteration_bounds = array<i64: 4>, scalar_prefetch = 0 : i64, scratch_operands = 0 : i64, tpu.core_type = #tpu.core_type<tc>, window_params = [{transform_indices = @transform_0, window_bounds = array<i64: 256, 128>}, {pipeline_mode = #tpu.pipeline_mode<synchronous>, transform_indices = @transform_1, window_bounds = array<i64: 256, 1>}, {pipeline_mode = #tpu.pipeline_mode<synchronous>, transform_indices = @transform_2, window_bounds = array<i64: 256, 256>}, {pipeline_mode = #tpu.pipeline_mode<synchronous>, transform_indices = @transform_3, window_bounds = array<i64: 128, 256>}, {pipeline_mode = #tpu.pipeline_mode<synchronous>, transform_indices = @transform_4, window_bounds = array<i64: 1, 128>}, {pipeline_mode = #tpu.pipeline_mode<synchronous>, transform_indices = @transform_5, window_bounds = array<i64: 256, 1>}, {pipeline_mode = #tpu.pipeline_mode<synchronous>, transform_indices = @transform_6, window_bounds = array<i64: 256, 256>}, {pipeline_mode = #tpu.pipeline_mode<synchronous>, transform_indices = @transform_7, window_bounds = array<i64: 128, 256>}, {pipeline_mode = #tpu.pipeline_mode<synchronous>, transform_indices = @transform_8, window_bounds = array<i64: 1, 128>}, {transform_indices = @transform_9, window_bounds = array<i64: 256, 128>}]} {
    %c0 = arith.constant 0 : index
    %c0_0 = arith.constant 0 : index
    %0 = vector.load %arg1[%c0, %c0_0] : memref<256x128xbf16, #tpu.memory_space<vmem>>, vector<256x128xbf16>
    %1 = arith.extf %0 : vector<256x128xbf16> to vector<256x128xf32>
    %c0_1 = arith.constant 0 : index
    %c0_2 = arith.constant 0 : index
    %2 = vector.load %arg4[%c0_1, %c0_2] : memref<128x256xbf16, #tpu.memory_space<vmem>>, vector<128x256xbf16>
    %cst = arith.constant dense<0.000000e+00> : vector<256x256xf32>
    %3 = tpu.matmul %0, %2, %cst {dimension_numbers = #tpu.dot_dimension_numbers<[1], [0], [0], [1], [0, 0, 1, 1], [], []>} : vector<256x128xbf16>, vector<128x256xbf16>, vector<256x256xf32> -> vector<256x256xf32>
    %c0_3 = arith.constant 0 : index
    %c0_4 = arith.constant 0 : index
    %4 = vector.load %arg2[%c0_3, %c0_4] : memref<256x1xf32, #tpu.memory_space<vmem>>, vector<256x1xf32>
    %5 = vector.extract_strided_slice %3 {offsets = [0, 0], sizes = [256, 128], strides = [1, 1]} : vector<256x256xf32> to vector<256x128xf32>
    %6 = vector.broadcast %4 : vector<256x1xf32> to vector<256x128xf32>
    %7 = arith.mulf %6, %5 : vector<256x128xf32>
    %c0_5 = arith.constant 0 : index
    %c0_6 = arith.constant 0 : index
    %8 = vector.load %arg3[%c0_5, %c0_6] : memref<256x256xbf16, #tpu.memory_space<vmem>>, vector<256x256xbf16>
    %9 = vector.extract_strided_slice %3 {offsets = [0, 128], sizes = [256, 128], strides = [1, 1]} : vector<256x256xf32> to vector<256x128xf32>
    %10 = arith.truncf %9 : vector<256x128xf32> to vector<256x128xbf16>
    %cst_7 = arith.constant dense<0.000000e+00> : vector<256x128xf32>
    %11 = tpu.matmul %8, %10, %cst_7 {dimension_numbers = #tpu.dot_dimension_numbers<[1], [0], [0], [1], [0, 0, 1, 1], [], []>} : vector<256x256xbf16>, vector<256x128xbf16>, vector<256x128xf32> -> vector<256x128xf32>
    %12 = arith.addf %7, %11 : vector<256x128xf32>
    %c0_8 = arith.constant 0 : index
    %c0_9 = arith.constant 0 : index
    %13 = vector.load %arg5[%c0_8, %c0_9] : memref<1x128xf32, #tpu.memory_space<vmem>>, vector<1x128xf32>
    %14 = vector.broadcast %13 : vector<1x128xf32> to vector<256x128xf32>
    %15 = arith.addf %12, %14 : vector<256x128xf32>
    %cst_10 = arith.constant 0.000000e+00 : f32
    %16 = vector.broadcast %cst_10 : f32 to vector<256x128xf32>
    %17 = arith.maximumf %15, %16 : vector<256x128xf32>
    %18 = arith.truncf %17 : vector<256x128xf32> to vector<256x128xbf16>
    %c0_11 = arith.constant 0 : index
    %c0_12 = arith.constant 0 : index
    %19 = vector.load %arg8[%c0_11, %c0_12] : memref<128x256xbf16, #tpu.memory_space<vmem>>, vector<128x256xbf16>
    %cst_13 = arith.constant dense<0.000000e+00> : vector<256x256xf32>
    %20 = tpu.matmul %18, %19, %cst_13 {dimension_numbers = #tpu.dot_dimension_numbers<[1], [0], [0], [1], [0, 0, 1, 1], [], []>} : vector<256x128xbf16>, vector<128x256xbf16>, vector<256x256xf32> -> vector<256x256xf32>
    %c0_14 = arith.constant 0 : index
    %c0_15 = arith.constant 0 : index
    %21 = vector.load %arg6[%c0_14, %c0_15] : memref<256x1xf32, #tpu.memory_space<vmem>>, vector<256x1xf32>
    %22 = vector.extract_strided_slice %20 {offsets = [0, 0], sizes = [256, 128], strides = [1, 1]} : vector<256x256xf32> to vector<256x128xf32>
    %23 = vector.broadcast %21 : vector<256x1xf32> to vector<256x128xf32>
    %24 = arith.mulf %23, %22 : vector<256x128xf32>
    %c0_16 = arith.constant 0 : index
    %c0_17 = arith.constant 0 : index
    %25 = vector.load %arg7[%c0_16, %c0_17] : memref<256x256xbf16, #tpu.memory_space<vmem>>, vector<256x256xbf16>
    %26 = vector.extract_strided_slice %20 {offsets = [0, 128], sizes = [256, 128], strides = [1, 1]} : vector<256x256xf32> to vector<256x128xf32>
    %27 = arith.truncf %26 : vector<256x128xf32> to vector<256x128xbf16>
    %cst_18 = arith.constant dense<0.000000e+00> : vector<256x128xf32>
    %28 = tpu.matmul %25, %27, %cst_18 {dimension_numbers = #tpu.dot_dimension_numbers<[1], [0], [0], [1], [0, 0, 1, 1], [], []>} : vector<256x256xbf16>, vector<256x128xbf16>, vector<256x128xf32> -> vector<256x128xf32>
    %29 = arith.addf %24, %28 : vector<256x128xf32>
    %c0_19 = arith.constant 0 : index
    %c0_20 = arith.constant 0 : index
    %30 = vector.load %arg9[%c0_19, %c0_20] : memref<1x128xf32, #tpu.memory_space<vmem>>, vector<1x128xf32>
    %31 = vector.broadcast %30 : vector<1x128xf32> to vector<256x128xf32>
    %32 = arith.addf %29, %31 : vector<256x128xf32>
    %cst_21 = arith.constant 0.000000e+00 : f32
    %33 = vector.broadcast %cst_21 : f32 to vector<256x128xf32>
    %34 = arith.maximumf %32, %33 : vector<256x128xf32>
    %35 = arith.addf %1, %34 : vector<256x128xf32>
    %36 = arith.truncf %35 : vector<256x128xf32> to vector<256x128xbf16>
    %c0_22 = arith.constant 0 : index
    %c0_23 = arith.constant 0 : index
    %37 = vector.load %arg10[%c0_22, %c0_23] : memref<256x128xbf16, #tpu.memory_space<vmem>>, vector<256x128xbf16>
    tpu.vector_store %arg10[%c0_22, %c0_23], %36 {strides = array<i32>} : memref<256x128xbf16, #tpu.memory_space<vmem>>, vector<256x128xbf16>,
    return
  }
  func.func @transform_0(%arg0: i32) -> (i32, i32) {
    %c0_i32 = arith.constant 0 : i32
    %c0_i32_0 = arith.constant 0 : i32
    return %arg0, %c0_i32 : i32, i32
  }
  func.func @transform_1(%arg0: i32) -> (i32, i32) {
    %c0_i32 = arith.constant 0 : i32
    %c0_i32_0 = arith.constant 0 : i32
    %c0_i32_1 = arith.constant 0 : i32
    return %c0_i32, %c0_i32_0 : i32, i32
  }
  func.func @transform_2(%arg0: i32) -> (i32, i32) {
    %c0_i32 = arith.constant 0 : i32
    %c0_i32_0 = arith.constant 0 : i32
    %c0_i32_1 = arith.constant 0 : i32
    return %c0_i32, %c0_i32_0 : i32, i32
  }
  func.func @transform_3(%arg0: i32) -> (i32, i32) {
    %c0_i32 = arith.constant 0 : i32
    %c0_i32_0 = arith.constant 0 : i32
    %c0_i32_1 = arith.constant 0 : i32
    return %c0_i32, %c0_i32_0 : i32, i32
  }
  func.func @transform_4(%arg0: i32) -> (i32, i32) {
    %c0_i32 = arith.constant 0 : i32
    %c0_i32_0 = arith.constant 0 : i32
    %c0_i32_1 = arith.constant 0 : i32
    return %c0_i32, %c0_i32_0 : i32, i32
  }
  func.func @transform_5(%arg0: i32) -> (i32, i32) {
    %c0_i32 = arith.constant 0 : i32
    %c0_i32_0 = arith.constant 0 : i32
    %c0_i32_1 = arith.constant 0 : i32
    return %c0_i32, %c0_i32_0 : i32, i32
  }
  func.func @transform_6(%arg0: i32) -> (i32, i32) {
    %c0_i32 = arith.constant 0 : i32
    %c0_i32_0 = arith.constant 0 : i32
    %c0_i32_1 = arith.constant 0 : i32
    return %c0_i32, %c0_i32_0 : i32, i32
  }
  func.func @transform_7(%arg0: i32) -> (i32, i32) {
    %c0_i32 = arith.constant 0 : i32
    %c0_i32_0 = arith.constant 0 : i32
    %c0_i32_1 = arith.constant 0 : i32
    return %c0_i32, %c0_i32_0 : i32, i32
  }
  func.func @transform_8(%arg0: i32) -> (i32, i32) {
    %c0_i32 = arith.constant 0 : i32
    %c0_i32_0 = arith.constant 0 : i32
    %c0_i32_1 = arith.constant 0 : i32
    return %c0_i32, %c0_i32_0 : i32, i32
  }
  func.func @transform_9(%arg0: i32) -> (i32, i32) {
    %c0_i32 = arith.constant 0 : i32
    %c0_i32_0 = arith.constant 0 : i32
    return %arg0, %c0_i32 : i32, i32
  }
}

</mosaic_0001>

<llo_original>
// kernel: _lambda_.1
$region0: #{_lambda_.1}
  #allocation0 [shape = 'u32[]', space=smem, size = 0x4, offset = 0x4, fixed_abs, tag = 'smem constant byte address 0x4 - core index']
  #allocation1 [shape = 'u32[144,128]{1,0:T(1,128)}', space=vmem, size = 0x12000, scoped, tag = 'internal scratch']
  %s0 = inlined_call_operand.hbm [shape: bf16[1024,128], index: 0, kind: input, shape index: {}]
  %s1 = inlined_call_operand.hbm [shape: f32[256,1], index: 1, kind: input, shape index: {}]
  %s2 = inlined_call_operand.hbm [shape: bf16[256,256], index: 2, kind: input, shape index: {}]
  %s3 = inlined_call_operand.hbm [shape: bf16[128,256], index: 3, kind: input, shape index: {}]
  %s4 = inlined_call_operand.vmem [shape: f32[1,128], index: 4, kind: input, shape index: {}]
  %s5 = inlined_call_operand.hbm [shape: f32[256,1], index: 5, kind: input, shape index: {}]
  %s6 = inlined_call_operand.hbm [shape: bf16[256,256], index: 6, kind: input, shape index: {}]
  %s7 = inlined_call_operand.hbm [shape: bf16[128,256], index: 7, kind: input, shape index: {}]
  %s8 = inlined_call_operand.vmem [shape: f32[1,128], index: 8, kind: input, shape index: {}]
  %s9 = inlined_call_operand.hbm [shape: bf16[1024,128], index: 9, kind: output, shape index: {}]
  %s10 = sld [smem:[#allocation0]]
  $region97: #{_lambda_.1} parent=0
    _
  %s12 = ssub.s32 1, %s10
  %s13 = scalar_select 0, %s12, %s10
  $region1: #{_lambda_.1} parent=0
    #allocation2 [shape = 'u8[131072]{0}', space=vmem, size = 0x20000, scoped, tag = 'input window, operand 0']
    #allocation3 [shape = 's32[2]{0}', space=sflag, size = 0x8, scoped, tag = 'scoped memory for _lambda_.1']
    #allocation4 [shape = 's32[2]{0}', space=sflag, size = 0x8, scoped, tag = 'scoped memory for _lambda_.1']
    #allocation5 [shape = 'u8[131072]{0}', space=vmem, size = 0x20000, scoped, tag = 'input window, operand 1, single buffered']
    #allocation6 [shape = 's32[1]{0}', space=sflag, size = 0x4, scoped, tag = 'scoped memory for _lambda_.1']
    #allocation7 [shape = 'u8[131072]{0}', space=vmem, size = 0x20000, scoped, tag = 'input window, operand 2, single buffered']
    #allocation8 [shape = 'u8[65536]{0}', space=vmem, size = 0x10000, scoped, tag = 'input window, operand 3, single buffered']
    #allocation9 [shape = 's32[1]{0}', space=sflag, size = 0x4, scoped, tag = 'scoped memory for _lambda_.1']
    #allocation10 [shape = 'u8[131072]{0}', space=vmem, size = 0x20000, scoped, tag = 'input window, operand 5, single buffered']
    #allocation11 [shape = 'u8[131072]{0}', space=vmem, size = 0x20000, scoped, tag = 'input window, operand 6, single buffered']
    #allocation12 [shape = 's32[1]{0}', space=sflag, size = 0x4, scoped, tag = 'scoped memory for _lambda_.1']
    #allocation13 [shape = 'u8[65536]{0}', space=vmem, size = 0x10000, scoped, tag = 'input window, operand 7, single buffered']
    #allocation14 [shape = 'u8[131072]{0}', space=vmem, size = 0x20000, scoped, tag = 'output window, operand 0']
    %14 = vsyncpa [#allocation3], 0
    %s15 = scalar_lea.sflag [#allocation3], 1
    %16 = vsyncpa %s15, 0
    %17 = vsyncpa [#allocation6], 0
    %18 = vsyncpa [#allocation9], 0
    %19 = vsyncpa [#allocation12], 0
    %20 = vsyncpa [#allocation4], 0
    %s21 = scalar_lea.sflag [#allocation4], 1
    %22 = vsyncpa %s21, 0
    loop: start=0, step=1, limit=6
    $region2: #{_lambda_.1} parent=1 // loop_pre_header
      _
    $region3: #{_lambda_.1} parent=1 // loop_header
      %s24 = sphi 0, %s28
      %p25 = scmp.ge.s32.totalorder %s24, 6
      %s34 = sphi 0, %s36
      %s37 = sphi 0, %s34
      %s38 = sphi 0, %s37
      %s54 = sphi 0, %s38
      %s58 = sphi 0, %s58
      %s60 = sphi 0, %s58
      %s61 = sphi 0, %s60
      %s75 = sphi 0, %s61
      %s79 = sphi 0, %s79
      %s81 = sphi 0, %s79
      %s82 = sphi 0, %s81
      %s96 = sphi 0, %s82
      %s100 = sphi 0, %s100
      %s102 = sphi 0, %s100
      %s103 = sphi 0, %s102
      %s117 = sphi 0, %s103
      %s121 = sphi 0, %s121
      %s123 = sphi 0, %s121
      %s124 = sphi 0, %s123
      %s138 = sphi 0, %s124
      %s142 = sphi 0, %s142
      %s144 = sphi 0, %s142
      %s145 = sphi 0, %s144
      %s159 = sphi 0, %s145
      %s163 = sphi 0, %s163
      %s165 = sphi 0, %s163
      %s166 = sphi 0, %s165
      %s180 = sphi 0, %s166
      %s184 = sphi 0, %s184
      %s186 = sphi 0, %s184
      %s187 = sphi 0, %s186
      %s201 = sphi 0, %s187
      %s205 = sphi 0, %s205
      %s207 = sphi 0, %s205
      %s208 = sphi 0, %s207
      %s222 = sphi 0, %s208
      %s228 = sphi 0, %s230
      %s231 = sphi 0, %s228
      %s232 = sphi 0, %s231
      %s248 = sphi 0, %s232
    $region4: #{_lambda_.1} parent=1 // loop_header_branch
      %27 = sbr.rel (%p25) target = $region8
    $region5: #{_lambda_.1} parent=1 // loop_body
      %s29 = ssub.s32 %s24, 1
      %s30 = ssub.s32 %s24, 2
      %s31 = sadd.s32 %s24, 1
      %s32 = ssub.s32 %s24, %s31
      %p33 = scmp.eq.s32.totalorder %s32, 0
      %s35 = sadd.s32 %s34, 1
      %s36 = scalar_select %p33, %s34, %s35
      %p39 = pneg %p33
      %p40 = scmp.eq.s32.totalorder %s24, 3
      %p41 = por %p39, %p40
      %p42 = scmp.ne.s32.totalorder %s34, %s37
      %p43 = scmp.eq.s32.totalorder %s24, 0
      %p44 = por %p42, %p43
      %p45 = scmp.ne.s32.totalorder %s34, %s37
      %p46 = scmp.eq.s32.totalorder %s29, 3
      %p47 = por %p45, %p46
      %p48 = scmp.ne.s32.totalorder %s37, %s38
      %p49 = scmp.eq.s32.totalorder %s29, 0
      %p50 = por %p48, %p49
      %p51 = scmp.ne.s32.totalorder %s37, %s38
      %p52 = scmp.eq.s32.totalorder %s30, 3
      %p53 = por %p51, %p52
      %p55 = scmp.ne.s32.totalorder %s38, %s54
      %p56 = scmp.eq.s32.totalorder %s30, 0
      %p57 = por %p55, %p56
      %s59 = sadd.s32 %s58, 1
      %p62 = scmp.eq.s32.totalorder %s24, 3
      %p63 = scmp.ne.s32.totalorder %s58, %s60
      %p64 = scmp.eq.s32.totalorder %s24, 0
      %p65 = por %p63, %p64
      %p66 = scmp.ne.s32.totalorder %s58, %s60
      %p67 = scmp.eq.s32.totalorder %s29, 3
      %p68 = por %p66, %p67
      %p69 = scmp.ne.s32.totalorder %s60, %s61
      %p70 = scmp.eq.s32.totalorder %s29, 0
      %p71 = por %p69, %p70
      %p72 = scmp.ne.s32.totalorder %s60, %s61
      %p73 = scmp.eq.s32.totalorder %s30, 3
      %p74 = por %p72, %p73
      %p76 = scmp.ne.s32.totalorder %s61, %s75
      %p77 = scmp.eq.s32.totalorder %s30, 0
      %p78 = por %p76, %p77
      %s80 = sadd.s32 %s79, 1
      %p83 = scmp.eq.s32.totalorder %s24, 3
      %p84 = scmp.ne.s32.totalorder %s79, %s81
      %p85 = scmp.eq.s32.totalorder %s24, 0
      %p86 = por %p84, %p85
      %p87 = scmp.ne.s32.totalorder %s79, %s81
      %p88 = scmp.eq.s32.totalorder %s29, 3
      %p89 = por %p87, %p88
      %p90 = scmp.ne.s32.totalorder %s81, %s82
      %p91 = scmp.eq.s32.totalorder %s29, 0
      %p92 = por %p90, %p91
      %p93 = scmp.ne.s32.totalorder %s81, %s82
      %p94 = scmp.eq.s32.totalorder %s30, 3
      %p95 = por %p93, %p94
      %p97 = scmp.ne.s32.totalorder %s82, %s96
      %p98 = scmp.eq.s32.totalorder %s30, 0
      %p99 = por %p97, %p98
      %s101 = sadd.s32 %s100, 1
      %p104 = scmp.eq.s32.totalorder %s24, 3
      %p105 = scmp.ne.s32.totalorder %s100, %s102
      %p106 = scmp.eq.s32.totalorder %s24, 0
      %p107 = por %p105, %p106
      %p108 = scmp.ne.s32.totalorder %s100, %s102
      %p109 = scmp.eq.s32.totalorder %s29, 3
      %p110 = por %p108, %p109
      %p111 = scmp.ne.s32.totalorder %s102, %s103
      %p112 = scmp.eq.s32.totalorder %s29, 0
      %p113 = por %p111, %p112
      %p114 = scmp.ne.s32.totalorder %s102, %s103
      %p115 = scmp.eq.s32.totalorder %s30, 3
      %p116 = por %p114, %p115
      %p118 = scmp.ne.s32.totalorder %s103, %s117
      %p119 = scmp.eq.s32.totalorder %s30, 0
      %p120 = por %p118, %p119
      %s122 = sadd.s32 %s121, 1
      %p125 = scmp.eq.s32.totalorder %s24, 3
      %p126 = scmp.ne.s32.totalorder %s121, %s123
      %p127 = scmp.eq.s32.totalorder %s24, 0
      %p128 = por %p126, %p127
      %p129 = scmp.ne.s32.totalorder %s121, %s123
      %p130 = scmp.eq.s32.totalorder %s29, 3
      %p131 = por %p129, %p130
      %p132 = scmp.ne.s32.totalorder %s123, %s124
      %p133 = scmp.eq.s32.totalorder %s29, 0
      %p134 = por %p132, %p133
      %p135 = scmp.ne.s32.totalorder %s123, %s124
      %p136 = scmp.eq.s32.totalorder %s30, 3
      %p137 = por %p135, %p136
      %p139 = scmp.ne.s32.totalorder %s124, %s138
      %p140 = scmp.eq.s32.totalorder %s30, 0
      %p141 = por %p139, %p140
      %s143 = sadd.s32 %s142, 1
      %p146 = scmp.eq.s32.totalorder %s24, 3
      %p147 = scmp.ne.s32.totalorder %s142, %s144
      %p148 = scmp.eq.s32.totalorder %s24, 0
      %p149 = por %p147, %p148
      %p150 = scmp.ne.s32.totalorder %s142, %s144
      %p151 = scmp.eq.s32.totalorder %s29, 3
      %p152 = por %p150, %p151
      %p153 = scmp.ne.s32.totalorder %s144, %s145
      %p154 = scmp.eq.s32.totalorder %s29, 0
      %p155 = por %p153, %p154
      %p156 = scmp.ne.s32.totalorder %s144, %s145
      %p157 = scmp.eq.s32.totalorder %s30, 3
      %p158 = por %p156, %p157
      %p160 = scmp.ne.s32.totalorder %s145, %s159
      %p161 = scmp.eq.s32.totalorder %s30, 0
      %p162 = por %p160, %p161
      %s164 = sadd.s32 %s163, 1
      %p167 = scmp.eq.s32.totalorder %s24, 3
      %p168 = scmp.ne.s32.totalorder %s163, %s165
      %p169 = scmp.eq.s32.totalorder %s24, 0
      %p170 = por %p168, %p169
      %p171 = scmp.ne.s32.totalorder %s163, %s165
      %p172 = scmp.eq.s32.totalorder %s29, 3
      %p173 = por %p171, %p172
      %p174 = scmp.ne.s32.totalorder %s165, %s166
      %p175 = scmp.eq.s32.totalorder %s29, 0
      %p176 = por %p174, %p175
      %p177 = scmp.ne.s32.totalorder %s165, %s166
      %p178 = scmp.eq.s32.totalorder %s30, 3
      %p179 = por %p177, %p178
      %p181 = scmp.ne.s32.totalorder %s166, %s180
      %p182 = scmp.eq.s32.totalorder %s30, 0
      %p183 = por %p181, %p182
      %s185 = sadd.s32 %s184, 1
      %p188 = scmp.eq.s32.totalorder %s24, 3
      %p189 = scmp.ne.s32.totalorder %s184, %s186
      %p190 = scmp.eq.s32.totalorder %s24, 0
      %p191 = por %p189, %p190
      %p192 = scmp.ne.s32.totalorder %s184, %s186
      %p193 = scmp.eq.s32.totalorder %s29, 3
      %p194 = por %p192, %p193
      %p195 = scmp.ne.s32.totalorder %s186, %s187
      %p196 = scmp.eq.s32.totalorder %s29, 0
      %p197 = por %p195, %p196
      %p198 = scmp.ne.s32.totalorder %s186, %s187
      %p199 = scmp.eq.s32.totalorder %s30, 3
      %p200 = por %p198, %p199
      %p202 = scmp.ne.s32.totalorder %s187, %s201
      %p203 = scmp.eq.s32.totalorder %s30, 0
      %p204 = por %p202, %p203
      %s206 = sadd.s32 %s205, 1
      %p209 = scmp.eq.s32.totalorder %s24, 3
      %p210 = scmp.ne.s32.totalorder %s205, %s207
      %p211 = scmp.eq.s32.totalorder %s24, 0
      %p212 = por %p210, %p211
      %p213 = scmp.ne.s32.totalorder %s205, %s207
      %p214 = scmp.eq.s32.totalorder %s29, 3
      %p215 = por %p213, %p214
      %p216 = scmp.ne.s32.totalorder %s207, %s208
      %p217 = scmp.eq.s32.totalorder %s29, 0
      %p218 = por %p216, %p217
      %p219 = scmp.ne.s32.totalorder %s207, %s208
      %p220 = scmp.eq.s32.totalorder %s30, 3
      %p221 = por %p219, %p220
      %p223 = scmp.ne.s32.totalorder %s208, %s222
      %p224 = scmp.eq.s32.totalorder %s30, 0
      %p225 = por %p223, %p224
      %s226 = ssub.s32 %s24, %s31
      %p227 = scmp.eq.s32.totalorder %s226, 0
      %s229 = sadd.s32 %s228, 1
      %s230 = scalar_select %p227, %s228, %s229
      %p233 = pneg %p227
      %p234 = scmp.eq.s32.totalorder %s24, 3
      %p235 = por %p233, %p234
      %p236 = scmp.ne.s32.totalorder %s228, %s231
      %p237 = scmp.eq.s32.totalorder %s24, 0
      %p238 = por %p236, %p237
      %p239 = scmp.ne.s32.totalorder %s228, %s231
      %p240 = scmp.eq.s32.totalorder %s29, 3
      %p241 = por %p239, %p240
      %p242 = scmp.ne.s32.totalorder %s231, %s232
      %p243 = scmp.eq.s32.totalorder %s29, 0
      %p244 = por %p242, %p243
      %p245 = scmp.ne.s32.totalorder %s231, %s232
      %p246 = scmp.eq.s32.totalorder %s30, 3
      %p247 = por %p245, %p246
      %p249 = scmp.ne.s32.totalorder %s232, %s248
      %p250 = scmp.eq.s32.totalorder %s30, 0
      %p251 = por %p249, %p250
      %p252 = scmp.le.s32.totalorder 1, %s24
      %p253 = scmp.lt.s32.totalorder %s24, 5
      %p254 = pnand %p252, %p253
      %p255 = pneg %p254
      // Predicated region
      $region9: #{_lambda_.1} parent=5 // pred_check
        _
      $region10: #{_lambda_.1} parent=5 // pred_check_branch
        %257 = sbr.rel (%p254) target = $region12
      $region11: #{_lambda_.1} parent=5 // pred_region
        %s258 = ssub.s32 %s24, 1
        // Predicated region
        $region13: #{_lambda_.1} parent=11 // pred_check
          %p259 = pneg %p71
        $region14: #{_lambda_.1} parent=11 // pred_check_branch
          %261 = sbr.rel (%p259) target = $region16
        $region15: #{_lambda_.1} parent=11 // pred_region
          %s263 = ssub.s32 4096, 4096
          %264 = vsyncadd [#allocation6], %s263
          %s265 = sshll.u32 [#allocation5], 4
          %s266 = int_to_ptr.vmem [resolvable:$true] %s265
          %271 = dma.hbm_to_vmem [thread:$0]  %s1, 4096, %s266, [#allocation6], 128, 128, 8
        $region16: #{_lambda_.1} parent=11 // pred_fallthru
          _
        // Predicated region
        $region17: #{_lambda_.1} parent=11 // pred_check
          %p272 = pneg %p92
        $region18: #{_lambda_.1} parent=11 // pred_check_branch
          %274 = sbr.rel (%p272) target = $region20
        $region19: #{_lambda_.1} parent=11 // pred_region
          %s276 = ssub.s32 4096, 4096
          %277 = vsyncadd [#allocation6], %s276
          %s278 = sshll.u32 [#allocation7], 4
          %s279 = int_to_ptr.vmem [resolvable:$true] %s278
          %284 = dma.hbm_to_vmem [thread:$0]  %s2, 4096, %s279, [#allocation6], 128, 128, 8
        $region20: #{_lambda_.1} parent=11 // pred_fallthru
          _
        // Predicated region
        $region21: #{_lambda_.1} parent=11 // pred_check
          %p285 = pneg %p113
        $region22: #{_lambda_.1} parent=11 // pred_check_branch
          %287 = sbr.rel (%p285) target = $region24
        $region23: #{_lambda_.1} parent=11 // pred_region
          %s289 = ssub.s32 2048, 2048
          %290 = vsyncadd [#allocation9], %s289
          %s291 = sshll.u32 [#allocation8], 4
          %s292 = int_to_ptr.vmem [resolvable:$true] %s291
          %297 = dma.hbm_to_vmem [thread:$0]  %s3, 2048, %s292, [#allocation9], 128, 128, 8
        $region24: #{_lambda_.1} parent=11 // pred_fallthru
          _
        // Predicated region
        $region25: #{_lambda_.1} parent=11 // pred_check
          %p298 = pneg %p134
        $region26: #{_lambda_.1} parent=11 // pred_check_branch
          %300 = sbr.rel (%p298) target = $region28
        $region27: #{_lambda_.1} parent=11 // pred_region
          _
        $region28: #{_lambda_.1} parent=11 // pred_fallthru
          _
        // Predicated region
        $region29: #{_lambda_.1} parent=11 // pred_check
          %p301 = pneg %p155
        $region30: #{_lambda_.1} parent=11 // pred_check_branch
          %303 = sbr.rel (%p301) target = $region32
        $region31: #{_lambda_.1} parent=11 // pred_region
          %s305 = ssub.s32 4096, 4096
          %306 = vsyncadd [#allocation9], %s305
          %s307 = sshll.u32 [#allocation10], 4
          %s308 = int_to_ptr.vmem [resolvable:$true] %s307
          %313 = dma.hbm_to_vmem [thread:$0]  %s5, 4096, %s308, [#allocation9], 128, 128, 8
        $region32: #{_lambda_.1} parent=11 // pred_fallthru
          _
        // Predicated region
        $region33: #{_lambda_.1} parent=11 // pred_check
          %p314 = pneg %p176
        $region34: #{_lambda_.1} parent=11 // pred_check_branch
          %316 = sbr.rel (%p314) target = $region36
        $region35: #{_lambda_.1} parent=11 // pred_region
          %s318 = ssub.s32 4096, 4096
          %319 = vsyncadd [#allocation12], %s318
          %s320 = sshll.u32 [#allocation11], 4
          %s321 = int_to_ptr.vmem [resolvable:$true] %s320
          %326 = dma.hbm_to_vmem [thread:$0]  %s6, 4096, %s321, [#allocation12], 128, 128, 8
        $region36: #{_lambda_.1} parent=11 // pred_fallthru
          _
        // Predicated region
        $region37: #{_lambda_.1} parent=11 // pred_check
          %p327 = pneg %p197
        $region38: #{_lambda_.1} parent=11 // pred_check_branch
          %329 = sbr.rel (%p327) target = $region40
        $region39: #{_lambda_.1} parent=11 // pred_region
          %s331 = ssub.s32 2048, 2048
          %332 = vsyncadd [#allocation12], %s331
          %s333 = sshll.u32 [#allocation13], 4
          %s334 = int_to_ptr.vmem [resolvable:$true] %s333
          %339 = dma.hbm_to_vmem [thread:$0]  %s7, 2048, %s334, [#allocation12], 128, 128, 8
        $region40: #{_lambda_.1} parent=11 // pred_fallthru
          _
        // Predicated region
        $region41: #{_lambda_.1} parent=11 // pred_check
          %p340 = pneg %p218
        $region42: #{_lambda_.1} parent=11 // pred_check_branch
          %342 = sbr.rel (%p340) target = $region44
        $region43: #{_lambda_.1} parent=11 // pred_region
          _
        $region44: #{_lambda_.1} parent=11 // pred_fallthru
          _
      $region12: #{_lambda_.1} parent=5 // pred_fallthru
        _
      %p343 = scmp.lt.s32.totalorder %s24, 4
      // Predicated region
      $region45: #{_lambda_.1} parent=5 // pred_check
        %p344 = pneg %p343
      $region46: #{_lambda_.1} parent=5 // pred_check_branch
        %346 = sbr.rel (%p344) target = $region48
      $region47: #{_lambda_.1} parent=5 // pred_region
        // Predicated region
        $region49: #{_lambda_.1} parent=47 // pred_check
          %p347 = pneg %p44
        $region50: #{_lambda_.1} parent=47 // pred_check_branch
          %349 = sbr.rel (%p347) target = $region52
        $region51: #{_lambda_.1} parent=47 // pred_region
          %s350 = sand.u32 %s34, 1
          %s351 = scalar_lea.sflag [#allocation3], %s350
          %s352 = sand.u32 %s34, 1
          %s353 = smul.addr %s352, 128
          %s354 = scalar_lea.vmem [#allocation2], %s353
          %s355 = smul.u32 32, %s24
          %s357 = ssub.s32 2048, 2048
          %358 = vsyncadd %s351, %s357
          %s359 = smul.addr %s355, 64
          %s360 = scalar_lea.hbm %s0, %s359
          %s361 = sshll.u32 %s354, 4
          %s362 = int_to_ptr.vmem [resolvable:$true] %s361
          %367 = dma.hbm_to_vmem [thread:$0]  %s360, 2048, %s362, %s351, 64, 64, 4
        $region52: #{_lambda_.1} parent=47 // pred_fallthru
          _
      $region48: #{_lambda_.1} parent=5 // pred_fallthru
        _
      %p368 = scmp.le.s32.totalorder 1, %s24
      %p369 = scmp.lt.s32.totalorder %s24, 5
      %p370 = pnand %p368, %p369
      %p371 = pneg %p370
      // Predicated region
      $region53: #{_lambda_.1} parent=5 // pred_check
        _
      $region54: #{_lambda_.1} parent=5 // pred_check_branch
        %373 = sbr.rel (%p370) target = $region56
      $region55: #{_lambda_.1} parent=5 // pred_region
        %s374 = ssub.s32 %s24, 1
        %s375 = sand.u32 %s37, 1
        %s376 = scalar_lea.sflag [#allocation3], %s375
        %s377 = sand.u32 %s37, 1
        %s378 = smul.addr %s377, 128
        %s379 = scalar_lea.vmem [#allocation2], %s378
        // Predicated region
        $region57: #{_lambda_.1} parent=55 // pred_check
          %p380 = pneg %p50
        $region58: #{_lambda_.1} parent=55 // pred_check_branch
          %382 = sbr.rel (%p380) target = $region60
        $region59: #{_lambda_.1} parent=55 // pred_region
          %383 = dma.done %s376, 2048
        $region60: #{_lambda_.1} parent=55 // pred_fallthru
          _
        // Predicated region
        $region61: #{_lambda_.1} parent=55 // pred_check
          %p384 = pneg %p71
        $region62: #{_lambda_.1} parent=55 // pred_check_branch
          %386 = sbr.rel (%p384) target = $region64
        $region63: #{_lambda_.1} parent=55 // pred_region
          %387 = dma.done [#allocation6], 4096
        $region64: #{_lambda_.1} parent=55 // pred_fallthru
          _
        // Predicated region
        $region65: #{_lambda_.1} parent=55 // pred_check
          %p388 = pneg %p92
        $region66: #{_lambda_.1} parent=55 // pred_check_branch
          %390 = sbr.rel (%p388) target = $region68
        $region67: #{_lambda_.1} parent=55 // pred_region
          %391 = dma.done [#allocation6], 4096
        $region68: #{_lambda_.1} parent=55 // pred_fallthru
          _
        // Predicated region
        $region69: #{_lambda_.1} parent=55 // pred_check
          %p392 = pneg %p113
        $region70: #{_lambda_.1} parent=55 // pred_check_branch
          %394 = sbr.rel (%p392) target = $region72
        $region71: #{_lambda_.1} parent=55 // pred_region
          %395 = dma.done [#allocation9], 2048
        $region72: #{_lambda_.1} parent=55 // pred_fallthru
          _
        // Predicated region
        $region73: #{_lambda_.1} parent=55 // pred_check
          %p396 = pneg %p155
        $region74: #{_lambda_.1} parent=55 // pred_check_branch
          %398 = sbr.rel (%p396) target = $region76
        $region75: #{_lambda_.1} parent=55 // pred_region
          %399 = dma.done [#allocation9], 4096
        $region76: #{_lambda_.1} parent=55 // pred_fallthru
          _
        // Predicated region
        $region77: #{_lambda_.1} parent=55 // pred_check
          %p400 = pneg %p176
        $region78: #{_lambda_.1} parent=55 // pred_check_branch
          %402 = sbr.rel (%p400) target = $region80
        $region79: #{_lambda_.1} parent=55 // pred_region
          %403 = dma.done [#allocation12], 4096
        $region80: #{_lambda_.1} parent=55 // pred_fallthru
          _
        // Predicated region
        $region81: #{_lambda_.1} parent=55 // pred_check
          %p404 = pneg %p197
        $region82: #{_lambda_.1} parent=55 // pred_check_branch
          %406 = sbr.rel (%p404) target = $region84
        $region83: #{_lambda_.1} parent=55 // pred_region
          %407 = dma.done [#allocation12], 2048
        $region84: #{_lambda_.1} parent=55 // pred_fallthru
          _
        %s408 = sand.u32 %s37, 1
        %s409 = scalar_lea.sflag [#allocation3], %s408
        %s410 = sand.u32 %s37, 1
        %s411 = smul.addr %s410, 128
        %s412 = scalar_lea.vmem [#allocation2], %s411
        %p413 = pneg %p50
        %p414 = pneg %p47
        %p415 = pneg %p71
        %p416 = pneg %p68
        %p417 = pneg %p92
        %p418 = pneg %p89
        %p419 = pneg %p113
        %p420 = pneg %p110
        %p421 = pneg %p134
        %p422 = pneg %p131
        %p423 = pneg %p155
        %p424 = pneg %p152
        %p425 = pneg %p176
        %p426 = pneg %p173
        %p427 = pneg %p197
        %p428 = pneg %p194
        %p429 = pneg %p218
        %p430 = pneg %p215
        %p431 = pneg %p244
        %p432 = pneg %p241
        %s433 = sand.u32 %s231, 1
        %s434 = scalar_lea.sflag [#allocation4], %s433
        %s435 = sand.u32 %s231, 1
        %s436 = smul.addr %s435, 128
        %s437 = scalar_lea.vmem [#allocation14], %s436
        %s438 = smul.u32 32, %s29
        %s439 = smul.u32 32, %s29
        %v441 = vld [vmem:[%s379] sm:$0xf]
        %v442 = vld [vmem:[%s379 + $0x4] sm:$0xf]
        %v443 = vld [vmem:[%s379 + $0x8] sm:$0xf]
        %v444 = vld [vmem:[%s379 + $0xc] sm:$0xf]
        %v445 = vld [vmem:[%s379 + $0x10] sm:$0xf]
        %v446 = vld [vmem:[%s379 + $0x14] sm:$0xf]
        %v447 = vld [vmem:[%s379 + $0x18] sm:$0xf]
        %v448 = vld [vmem:[%s379 + $0x1c] sm:$0xf]
        %v449 = vld [vmem:[%s379 + $0x20] sm:$0xf]
        %v450 = vld [vmem:[%s379 + $0x24] sm:$0xf]
        %v451 = vld [vmem:[%s379 + $0x28] sm:$0xf]
        %v452 = vld [vmem:[%s379 + $0x2c] sm:$0xf]
        %v453 = vld [vmem:[%s379 + $0x30] sm:$0xf]
        %v454 = vld [vmem:[%s379 + $0x34] sm:$0xf]
        %v455 = vld [vmem:[%s379 + $0x38] sm:$0xf]
        %v456 = vld [vmem:[%s379 + $0x3c] sm:$0xf]
        %v457 = vld [vmem:[%s379 + $0x40] sm:$0xf]
        %v458 = vld [vmem:[%s379 + $0x44] sm:$0xf]
        %v459 = vld [vmem:[%s379 + $0x48] sm:$0xf]
        %v460 = vld [vmem:[%s379 + $0x4c] sm:$0xf]
        %v461 = vld [vmem:[%s379 + $0x50] sm:$0xf]
        %v462 = vld [vmem:[%s379 + $0x54] sm:$0xf]
        %v463 = vld [vmem:[%s379 + $0x58] sm:$0xf]
        %v464 = vld [vmem:[%s379 + $0x5c] sm:$0xf]
        %v465 = vld [vmem:[%s379 + $0x60] sm:$0xf]
        %v466 = vld [vmem:[%s379 + $0x64] sm:$0xf]
        %v467 = vld [vmem:[%s379 + $0x68] sm:$0xf]
        %v468 = vld [vmem:[%s379 + $0x6c] sm:$0xf]
        %v469 = vld [vmem:[%s379 + $0x70] sm:$0xf]
        %v470 = vld [vmem:[%s379 + $0x74] sm:$0xf]
        %v471 = vld [vmem:[%s379 + $0x78] sm:$0xf]
        %v472 = vld [vmem:[%s379 + $0x7c] sm:$0xf]
        %v473 = vunpack.c.l.bf16 %v441
        %v474 = vunpack.c.l.bf16 %v442
        %v475 = vunpack.c.l.bf16 %v443
        %v476 = vunpack.c.l.bf16 %v444
        %v477 = vunpack.c.l.bf16 %v445
        %v478 = vunpack.c.l.bf16 %v446
        %v479 = vunpack.c.l.bf16 %v447
        %v480 = vunpack.c.l.bf16 %v448
        %v481 = vunpack.c.l.bf16 %v449
        %v482 = vunpack.c.l.bf16 %v450
        %v483 = vunpack.c.l.bf16 %v451
        %v484 = vunpack.c.l.bf16 %v452
        %v485 = vunpack.c.l.bf16 %v453
        %v486 = vunpack.c.l.bf16 %v454
        %v487 = vunpack.c.l.bf16 %v455
        %v488 = vunpack.c.l.bf16 %v456
        %v489 = vunpack.c.l.bf16 %v457
        %v490 = vunpack.c.l.bf16 %v458
        %v491 = vunpack.c.l.bf16 %v459
        %v492 = vunpack.c.l.bf16 %v460
        %v493 = vunpack.c.l.bf16 %v461
        %v494 = vunpack.c.l.bf16 %v462
        %v495 = vunpack.c.l.bf16 %v463
        %v496 = vunpack.c.l.bf16 %v464
        %v497 = vunpack.c.l.bf16 %v465
        %v498 = vunpack.c.l.bf16 %v466
        %v499 = vunpack.c.l.bf16 %v467
        %v500 = vunpack.c.l.bf16 %v468
        %v501 = vunpack.c.l.bf16 %v469
        %v502 = vunpack.c.l.bf16 %v470
        %v503 = vunpack.c.l.bf16 %v471
        %v504 = vunpack.c.l.bf16 %v472
        %v505 = vld [vmem:[#allocation8] sm:$0xff]
        %v506 = vld [vmem:[#allocation8 + $0x8] sm:$0xff]
        %v507 = vld [vmem:[#allocation8 + $0x10] sm:$0xff]
        %v508 = vld [vmem:[#allocation8 + $0x18] sm:$0xff]
        %v509 = vld [vmem:[#allocation8 + $0x20] sm:$0xff]
        %v510 = vld [vmem:[#allocation8 + $0x28] sm:$0xff]
        %v511 = vld [vmem:[#allocation8 + $0x30] sm:$0xff]
        %v512 = vld [vmem:[#allocation8 + $0x38] sm:$0xff]
        %v513 = vld [vmem:[#allocation8 + $0x40] sm:$0xff]
        %v514 = vld [vmem:[#allocation8 + $0x48] sm:$0xff]
        %v515 = vld [vmem:[#allocation8 + $0x50] sm:$0xff]
        %v516 = vld [vmem:[#allocation8 + $0x58] sm:$0xff]
        %v517 = vld [vmem:[#allocation8 + $0x60] sm:$0xff]
        %v518 = vld [vmem:[#allocation8 + $0x68] sm:$0xff]
        %v519 = vld [vmem:[#allocation8 + $0x70] sm:$0xff]
        %v520 = vld [vmem:[#allocation8 + $0x78] sm:$0xff]
        %v553 = vunpack.c.l.b16 %v441
        %v554 = vunpack.c.l.b16 %v442
        %v555 = vunpack.c.l.b16 %v443
        %v556 = vunpack.c.l.b16 %v444
        %v557 = vunpack.c.l.b16 %v445
        %v558 = vunpack.c.l.b16 %v446
        %v559 = vunpack.c.l.b16 %v447
        %v560 = vunpack.c.l.b16 %v448
        %v561 = vunpack.c.l.b16 %v449
        %v562 = vunpack.c.l.b16 %v450
        %v563 = vunpack.c.l.b16 %v451
        %v564 = vunpack.c.l.b16 %v452
        %v565 = vunpack.c.l.b16 %v453
        %v566 = vunpack.c.l.b16 %v454
        %v567 = vunpack.c.l.b16 %v455
        %v568 = vunpack.c.l.b16 %v456
        %v569 = vunpack.c.l.b16 %v457
        %v570 = vunpack.c.l.b16 %v458
        %v571 = vunpack.c.l.b16 %v459
        %v572 = vunpack.c.l.b16 %v460
        %v573 = vunpack.c.l.b16 %v461
        %v574 = vunpack.c.l.b16 %v462
        %v575 = vunpack.c.l.b16 %v463
        %v576 = vunpack.c.l.b16 %v464
        %v577 = vunpack.c.l.b16 %v465
        %v578 = vunpack.c.l.b16 %v466
        %v579 = vunpack.c.l.b16 %v467
        %v580 = vunpack.c.l.b16 %v468
        %v581 = vunpack.c.l.b16 %v469
        %v582 = vunpack.c.l.b16 %v470
        %v583 = vunpack.c.l.b16 %v471
        %v584 = vunpack.c.l.b16 %v472
        %v585 = vpack.c.b16 %v554, %v553
        %v586 = vpack.c.b16 %v556, %v555
        %v587 = vpack.c.b16 %v558, %v557
        %v588 = vpack.c.b16 %v560, %v559
        %v589 = vpack.c.b16 %v562, %v561
        %v590 = vpack.c.b16 %v564, %v563
        %v591 = vpack.c.b16 %v566, %v565
        %v592 = vpack.c.b16 %v568, %v567
        %v593 = vpack.c.b16 %v570, %v569
        %v594 = vpack.c.b16 %v572, %v571
        %v595 = vpack.c.b16 %v574, %v573
        %v596 = vpack.c.b16 %v576, %v575
        %v597 = vpack.c.b16 %v578, %v577
        %v598 = vpack.c.b16 %v580, %v579
        %v599 = vpack.c.b16 %v582, %v581
        %v600 = vpack.c.b16 %v584, %v583
        %v633 = vunpack.c.l.b16 %v505
        %v634 = vunpack.c.h.b16 %v505
        %v635 = vunpack.c.l.b16 %v506
        %v636 = vunpack.c.h.b16 %v506
        %v637 = vunpack.c.l.b16 %v507
        %v638 = vunpack.c.h.b16 %v507
        %v639 = vunpack.c.l.b16 %v508
        %v640 = vunpack.c.h.b16 %v508
        %v641 = vunpack.c.l.b16 %v509
        %v642 = vunpack.c.h.b16 %v509
        %v643 = vunpack.c.l.b16 %v510
        %v644 = vunpack.c.h.b16 %v510
        %v645 = vunpack.c.l.b16 %v511
        %v646 = vunpack.c.h.b16 %v511
        %v647 = vunpack.c.l.b16 %v512
        %v648 = vunpack.c.h.b16 %v512
        %v649 = vunpack.c.l.b16 %v513
        %v650 = vunpack.c.h.b16 %v513
        %v651 = vunpack.c.l.b16 %v514
        %v652 = vunpack.c.h.b16 %v514
        %v653 = vunpack.c.l.b16 %v515
        %v654 = vunpack.c.h.b16 %v515
        %v655 = vunpack.c.l.b16 %v516
        %v656 = vunpack.c.h.b16 %v516
        %v657 = vunpack.c.l.b16 %v517
        %v658 = vunpack.c.h.b16 %v517
        %v659 = vunpack.c.l.b16 %v518
        %v660 = vunpack.c.h.b16 %v518
        %v661 = vunpack.c.l.b16 %v519
        %v662 = vunpack.c.h.b16 %v519
        %v663 = vunpack.c.l.b16 %v520
        %v664 = vunpack.c.h.b16 %v520
        %v665 = vpack.c.b16 %v635, %v633
        %v666 = vpack.c.b16 %v636, %v634
        %v667 = vpack.c.b16 %v639, %v637
        %v668 = vpack.c.b16 %v640, %v638
        %v669 = vpack.c.b16 %v643, %v641
        %v670 = vpack.c.b16 %v644, %v642
        %v671 = vpack.c.b16 %v647, %v645
        %v672 = vpack.c.b16 %v648, %v646
        %v673 = vpack.c.b16 %v651, %v649
        %v674 = vpack.c.b16 %v652, %v650
        %v675 = vpack.c.b16 %v655, %v653
        %v676 = vpack.c.b16 %v656, %v654
        %v677 = vpack.c.b16 %v659, %v657
        %v678 = vpack.c.b16 %v660, %v658
        %v679 = vpack.c.b16 %v663, %v661
        %v680 = vpack.c.b16 %v664, %v662
        %697 = vmatprep.subr.bf16.mxu0 %v680
        %698 = vmatpush1.bf16.msra.mxu0 %v679
        %699 = vmatprep.subr.bf16.mxu0 %v678
        %700 = vmatpush1.bf16.msra.mxu0 %v677
        %701 = vmatprep.subr.bf16.mxu0 %v676
        %702 = vmatpush1.bf16.msra.mxu0 %v675
        %703 = vmatprep.subr.bf16.mxu0 %v674
        %704 = vmatpush1.bf16.msra.mxu0 %v673
        %705 = vmatprep.subr.bf16.mxu0 %v672
        %706 = vmatpush1.bf16.msra.mxu0 %v671
        %707 = vmatprep.subr.bf16.mxu0 %v670
        %708 = vmatpush1.bf16.msra.mxu0 %v669
        %709 = vmatprep.subr.bf16.mxu0 %v668
        %710 = vmatpush1.bf16.msra.mxu0 %v667
        %711 = vmatprep.subr.bf16.mxu0 %v666
        %712 = vmatpush1.bf16.msra.mxu0 %v665
        %713 = vmatprep.subr.bf16.mxu0 0
        %714 = vmatpush2.bf16.msra.mxu0 0
        %715 = vmatprep.subr.bf16.mxu0 0
        %716 = vmatpush2.bf16.msra.mxu0 0
        %717 = vmatprep.subr.bf16.mxu0 0
        %718 = vmatpush2.bf16.msra.mxu0 0
        %719 = vmatprep.subr.bf16.mxu0 0
        %720 = vmatpush2.bf16.msra.mxu0 0
        %721 = vmatprep.subr.bf16.mxu0 0
        %722 = vmatpush2.bf16.msra.mxu0 0
        %723 = vmatprep.subr.bf16.mxu0 0
        %724 = vmatpush2.bf16.msra.mxu0 0
        %725 = vmatprep.subr.bf16.mxu0 0
        %726 = vmatpush2.bf16.msra.mxu0 0
        %727 = vmatprep.subr.bf16.mxu0 0
        %728 = vmatpush2.bf16.msra.mxu0 0
        %729 = vmatprep.mubr.bf16.mxu0 0
        %730 = vmatmul.mubr.bf16.gmra.mxu0 %v585
        %v731 = vpop.f32.mrf.mxu0
        %v732 = vadd.f32 0.0, %v731
        %v733 = vpop.f32.mrf.mxu0
        %v734 = vadd.f32 0.0, %v733
        %v735 = vpop.f32.mrf.mxu0
        %v736 = vadd.f32 0.0, %v735
        %v737 = vpop.f32.mrf.mxu0
        %v738 = vadd.f32 0.0, %v737
        %739 = vmatprep.mubr.bf16.mxu0 0
        %740 = vmatmul.mubr.bf16.gmra.mxu0 %v586
        %v741 = vpop.f32.mrf.mxu0
        %v742 = vadd.f32 0.0, %v741
        %v743 = vpop.f32.mrf.mxu0
        %v744 = vadd.f32 0.0, %v743
        %v745 = vpop.f32.mrf.mxu0
        %v746 = vadd.f32 0.0, %v745
        %v747 = vpop.f32.mrf.mxu0
        %v748 = vadd.f32 0.0, %v747
        %749 = vmatprep.mubr.bf16.mxu0 0
        %750 = vmatmul.mubr.bf16.gmra.mxu0 %v587
        %v751 = vpop.f32.mrf.mxu0
        %v752 = vadd.f32 0.0, %v751
        %v753 = vpop.f32.mrf.mxu0
        %v754 = vadd.f32 0.0, %v753
        %v755 = vpop.f32.mrf.mxu0
        %v756 = vadd.f32 0.0, %v755
        %v757 = vpop.f32.mrf.mxu0
        %v758 = vadd.f32 0.0, %v757
        %759 = vmatprep.mubr.bf16.mxu0 0
        %760 = vmatmul.mubr.bf16.gmra.mxu0 %v588
        %v761 = vpop.f32.mrf.mxu0
        %v762 = vadd.f32 0.0, %v761
        %v763 = vpop.f32.mrf.mxu0
        %v764 = vadd.f32 0.0, %v763
        %v765 = vpop.f32.mrf.mxu0
        %v766 = vadd.f32 0.0, %v765
        %v767 = vpop.f32.mrf.mxu0
        %v768 = vadd.f32 0.0, %v767
        %769 = vmatprep.mubr.bf16.mxu0 0
        %770 = vmatmul.mubr.bf16.gmra.mxu0 %v589
        %v771 = vpop.f32.mrf.mxu0
        %v772 = vadd.f32 0.0, %v771
        %v773 = vpop.f32.mrf.mxu0
        %v774 = vadd.f32 0.0, %v773
        %v775 = vpop.f32.mrf.mxu0
        %v776 = vadd.f32 0.0, %v775
        %v777 = vpop.f32.mrf.mxu0
        %v778 = vadd.f32 0.0, %v777
        %779 = vmatprep.mubr.bf16.mxu0 0
        %780 = vmatmul.mubr.bf16.gmra.mxu0 %v590
        %v781 = vpop.f32.mrf.mxu0
        %v782 = vadd.f32 0.0, %v781
        %v783 = vpop.f32.mrf.mxu0
        %v784 = vadd.f32 0.0, %v783
        %v785 = vpop.f32.mrf.mxu0
        %v786 = vadd.f32 0.0, %v785
        %v787 = vpop.f32.mrf.mxu0
        %v788 = vadd.f32 0.0, %v787
        %789 = vmatprep.mubr.bf16.mxu0 0
        %790 = vmatmul.mubr.bf16.gmra.mxu0 %v591
        %v791 = vpop.f32.mrf.mxu0
        %v792 = vadd.f32 0.0, %v791
        %v793 = vpop.f32.mrf.mxu0
        %v794 = vadd.f32 0.0, %v793
        %v795 = vpop.f32.mrf.mxu0
        %v796 = vadd.f32 0.0, %v795
        %v797 = vpop.f32.mrf.mxu0
        %v798 = vadd.f32 0.0, %v797
        %799 = vmatprep.mubr.bf16.mxu0 0
        %800 = vmatmul.mubr.bf16.gmra.mxu0 %v592
        %v801 = vpop.f32.mrf.mxu0
        %v802 = vadd.f32 0.0, %v801
        %v803 = vpop.f32.mrf.mxu0
        %v804 = vadd.f32 0.0, %v803
        %v805 = vpop.f32.mrf.mxu0
        %v806 = vadd.f32 0.0, %v805
        %v807 = vpop.f32.mrf.mxu0
        %v808 = vadd.f32 0.0, %v807
        %809 = vmatprep.mubr.bf16.mxu0 0
        %810 = vmatmul.mubr.bf16.gmra.mxu0 %v593
        %v811 = vpop.f32.mrf.mxu0
        %v812 = vadd.f32 0.0, %v811
        %v813 = vpop.f32.mrf.mxu0
        %v814 = vadd.f32 0.0, %v813
        %v815 = vpop.f32.mrf.mxu0
        %v816 = vadd.f32 0.0, %v815
        %v817 = vpop.f32.mrf.mxu0
        %v818 = vadd.f32 0.0, %v817
        %819 = vmatprep.mubr.bf16.mxu0 0
        %820 = vmatmul.mubr.bf16.gmra.mxu0 %v594
        %v821 = vpop.f32.mrf.mxu0
        %v822 = vadd.f32 0.0, %v821
        %v823 = vpop.f32.mrf.mxu0
        %v824 = vadd.f32 0.0, %v823
        %v825 = vpop.f32.mrf.mxu0
        %v826 = vadd.f32 0.0, %v825
        %v827 = vpop.f32.mrf.mxu0
        %v828 = vadd.f32 0.0, %v827
        %829 = vmatprep.mubr.bf16.mxu0 0
        %830 = vmatmul.mubr.bf16.gmra.mxu0 %v595
        %v831 = vpop.f32.mrf.mxu0
        %v832 = vadd.f32 0.0, %v831
        %v833 = vpop.f32.mrf.mxu0
        %v834 = vadd.f32 0.0, %v833
        %v835 = vpop.f32.mrf.mxu0
        %v836 = vadd.f32 0.0, %v835
        %v837 = vpop.f32.mrf.mxu0
        %v838 = vadd.f32 0.0, %v837
        %839 = vmatprep.mubr.bf16.mxu0 0
        %840 = vmatmul.mubr.bf16.gmra.mxu0 %v596
        %v841 = vpop.f32.mrf.mxu0
        %v842 = vadd.f32 0.0, %v841
        %v843 = vpop.f32.mrf.mxu0
        %v844 = vadd.f32 0.0, %v843
        %v845 = vpop.f32.mrf.mxu0
        %v846 = vadd.f32 0.0, %v845
        %v847 = vpop.f32.mrf.mxu0
        %v848 = vadd.f32 0.0, %v847
        %849 = vmatprep.mubr.bf16.mxu0 0
        %850 = vmatmul.mubr.bf16.gmra.mxu0 %v597
        %v851 = vpop.f32.mrf.mxu0
        %v852 = vadd.f32 0.0, %v851
        %v853 = vpop.f32.mrf.mxu0
        %v854 = vadd.f32 0.0, %v853
        %v855 = vpop.f32.mrf.mxu0
        %v856 = vadd.f32 0.0, %v855
        %v857 = vpop.f32.mrf.mxu0
        %v858 = vadd.f32 0.0, %v857
        %859 = vmatprep.mubr.bf16.mxu0 0
        %860 = vmatmul.mubr.bf16.gmra.mxu0 %v598
        %v861 = vpop.f32.mrf.mxu0
        %v862 = vadd.f32 0.0, %v861
        %v863 = vpop.f32.mrf.mxu0
        %v864 = vadd.f32 0.0, %v863
        %v865 = vpop.f32.mrf.mxu0
        %v866 = vadd.f32 0.0, %v865
        %v867 = vpop.f32.mrf.mxu0
        %v868 = vadd.f32 0.0, %v867
        %869 = vmatprep.mubr.bf16.mxu0 0
        %870 = vmatmul.mubr.bf16.gmra.mxu0 %v599
        %v871 = vpop.f32.mrf.mxu0
        %v872 = vadd.f32 0.0, %v871
        %v873 = vpop.f32.mrf.mxu0
        %v874 = vadd.f32 0.0, %v873
        %v875 = vpop.f32.mrf.mxu0
        %v876 = vadd.f32 0.0, %v875
        %v877 = vpop.f32.mrf.mxu0
        %v878 = vadd.f32 0.0, %v877
        %879 = vmatprep.mubr.bf16.mxu0 0
        %880 = vmatmul.mubr.bf16.gmra.mxu0 %v600
        %v881 = vpop.f32.mrf.mxu0
        %v882 = vadd.f32 0.0, %v881
        %v883 = vpop.f32.mrf.mxu0
        %v884 = vadd.f32 0.0, %v883
        %v885 = vpop.f32.mrf.mxu0
        %v886 = vadd.f32 0.0, %v885
        %v887 = vpop.f32.mrf.mxu0
        %v888 = vadd.f32 0.0, %v887
        %889 = vdwg.mxu0
        %v890 = vld [vmem:[#allocation5] sm:$0xff]
        %v891 = vld [vmem:[#allocation5 + $0x8] sm:$0xff]
        %v892 = vld [vmem:[#allocation5 + $0x10] sm:$0xff]
        %v893 = vld [vmem:[#allocation5 + $0x18] sm:$0xff]
        %v894 = vld [vmem:[#allocation5 + $0x20] sm:$0xff]
        %v895 = vld [vmem:[#allocation5 + $0x28] sm:$0xff]
        %v896 = vld [vmem:[#allocation5 + $0x30] sm:$0xff]
        %v897 = vld [vmem:[#allocation5 + $0x38] sm:$0xff]
        %v898 = vld [vmem:[#allocation5 + $0x40] sm:$0xff]
        %v899 = vld [vmem:[#allocation5 + $0x48] sm:$0xff]
        %v900 = vld [vmem:[#allocation5 + $0x50] sm:$0xff]
        %v901 = vld [vmem:[#allocation5 + $0x58] sm:$0xff]
        %v902 = vld [vmem:[#allocation5 + $0x60] sm:$0xff]
        %v903 = vld [vmem:[#allocation5 + $0x68] sm:$0xff]
        %v904 = vld [vmem:[#allocation5 + $0x70] sm:$0xff]
        %v905 = vld [vmem:[#allocation5 + $0x78] sm:$0xff]
        %v906 = vld [vmem:[#allocation5 + $0x80] sm:$0xff]
        %v907 = vld [vmem:[#allocation5 + $0x88] sm:$0xff]
        %v908 = vld [vmem:[#allocation5 + $0x90] sm:$0xff]
        %v909 = vld [vmem:[#allocation5 + $0x98] sm:$0xff]
        %v910 = vld [vmem:[#allocation5 + $0xa0] sm:$0xff]
        %v911 = vld [vmem:[#allocation5 + $0xa8] sm:$0xff]
        %v912 = vld [vmem:[#allocation5 + $0xb0] sm:$0xff]
        %v913 = vld [vmem:[#allocation5 + $0xb8] sm:$0xff]
        %v914 = vld [vmem:[#allocation5 + $0xc0] sm:$0xff]
        %v915 = vld [vmem:[#allocation5 + $0xc8] sm:$0xff]
        %v916 = vld [vmem:[#allocation5 + $0xd0] sm:$0xff]
        %v917 = vld [vmem:[#allocation5 + $0xd8] sm:$0xff]
        %v918 = vld [vmem:[#allocation5 + $0xe0] sm:$0xff]
        %v919 = vld [vmem:[#allocation5 + $0xe8] sm:$0xff]
        %v920 = vld [vmem:[#allocation5 + $0xf0] sm:$0xff]
        %v921 = vld [vmem:[#allocation5 + $0xf8] sm:$0xff]
        %923 = vset.pattern.permute.xlu0 0
        %924 = vperm.xlu0 %923, %v890
        %v925 = vpop.permute.xlu0 %924
        %928 = vset.pattern.permute.xlu0 0
        %929 = vperm.xlu0 %928, %v891
        %v930 = vpop.permute.xlu0 %929
        %933 = vset.pattern.permute.xlu0 0
        %934 = vperm.xlu0 %933, %v892
        %v935 = vpop.permute.xlu0 %934
        %938 = vset.pattern.permute.xlu0 0
        %939 = vperm.xlu0 %938, %v893
        %v940 = vpop.permute.xlu0 %939
        %943 = vset.pattern.permute.xlu0 0
        %944 = vperm.xlu0 %943, %v894
        %v945 = vpop.permute.xlu0 %944
        %948 = vset.pattern.permute.xlu0 0
        %949 = vperm.xlu0 %948, %v895
        %v950 = vpop.permute.xlu0 %949
        %953 = vset.pattern.permute.xlu0 0
        %954 = vperm.xlu0 %953, %v896
        %v955 = vpop.permute.xlu0 %954
        %958 = vset.pattern.permute.xlu0 0
        %959 = vperm.xlu0 %958, %v897
        %v960 = vpop.permute.xlu0 %959
        %963 = vset.pattern.permute.xlu0 0
        %964 = vperm.xlu0 %963, %v898
        %v965 = vpop.permute.xlu0 %964
        %968 = vset.pattern.permute.xlu0 0
        %969 = vperm.xlu0 %968, %v899
        %v970 = vpop.permute.xlu0 %969
        %973 = vset.pattern.permute.xlu0 0
        %974 = vperm.xlu0 %973, %v900
        %v975 = vpop.permute.xlu0 %974
        %978 = vset.pattern.permute.xlu0 0
        %979 = vperm.xlu0 %978, %v901
        %v980 = vpop.permute.xlu0 %979
        %983 = vset.pattern.permute.xlu0 0
        %984 = vperm.xlu0 %983, %v902
        %v985 = vpop.permute.xlu0 %984
        %988 = vset.pattern.permute.xlu0 0
        %989 = vperm.xlu0 %988, %v903
        %v990 = vpop.permute.xlu0 %989
        %993 = vset.pattern.permute.xlu0 0
        %994 = vperm.xlu0 %993, %v904
        %v995 = vpop.permute.xlu0 %994
        %998 = vset.pattern.permute.xlu0 0
        %999 = vperm.xlu0 %998, %v905
        %v1000 = vpop.permute.xlu0 %999
        %1003 = vset.pattern.permute.xlu0 0
        %1004 = vperm.xlu0 %1003, %v906
        %v1005 = vpop.permute.xlu0 %1004
        %1008 = vset.pattern.permute.xlu0 0
        %1009 = vperm.xlu0 %1008, %v907
        %v1010 = vpop.permute.xlu0 %1009
        %1013 = vset.pattern.permute.xlu0 0
        %1014 = vperm.xlu0 %1013, %v908
        %v1015 = vpop.permute.xlu0 %1014
        %1018 = vset.pattern.permute.xlu0 0
        %1019 = vperm.xlu0 %1018, %v909
        %v1020 = vpop.permute.xlu0 %1019
        %1023 = vset.pattern.permute.xlu0 0
        %1024 = vperm.xlu0 %1023, %v910
        %v1025 = vpop.permute.xlu0 %1024
        %1028 = vset.pattern.permute.xlu0 0
        %1029 = vperm.xlu0 %1028, %v911
        %v1030 = vpop.permute.xlu0 %1029
        %1033 = vset.pattern.permute.xlu0 0
        %1034 = vperm.xlu0 %1033, %v912
        %v1035 = vpop.permute.xlu0 %1034
        %1038 = vset.pattern.permute.xlu0 0
        %1039 = vperm.xlu0 %1038, %v913
        %v1040 = vpop.permute.xlu0 %1039
        %1043 = vset.pattern.permute.xlu0 0
        %1044 = vperm.xlu0 %1043, %v914
        %v1045 = vpop.permute.xlu0 %1044
        %1048 = vset.pattern.permute.xlu0 0
        %1049 = vperm.xlu0 %1048, %v915
        %v1050 = vpop.permute.xlu0 %1049
        %1053 = vset.pattern.permute.xlu0 0
        %1054 = vperm.xlu0 %1053, %v916
        %v1055 = vpop.permute.xlu0 %1054
        %1058 = vset.pattern.permute.xlu0 0
        %1059 = vperm.xlu0 %1058, %v917
        %v1060 = vpop.permute.xlu0 %1059
        %1063 = vset.pattern.permute.xlu0 0
        %1064 = vperm.xlu0 %1063, %v918
        %v1065 = vpop.permute.xlu0 %1064
        %1068 = vset.pattern.permute.xlu0 0
        %1069 = vperm.xlu0 %1068, %v919
        %v1070 = vpop.permute.xlu0 %1069
        %1073 = vset.pattern.permute.xlu0 0
        %1074 = vperm.xlu0 %1073, %v920
        %v1075 = vpop.permute.xlu0 %1074
        %1078 = vset.pattern.permute.xlu0 0
        %1079 = vperm.xlu0 %1078, %v921
        %v1080 = vpop.permute.xlu0 %1079
        %v1082 = vmul.f32 %v925, %v732
        %v1083 = vmul.f32 %v930, %v736
        %v1084 = vmul.f32 %v935, %v742
        %v1085 = vmul.f32 %v940, %v746
        %v1086 = vmul.f32 %v945, %v752
        %v1087 = vmul.f32 %v950, %v756
        %v1088 = vmul.f32 %v955, %v762
        %v1089 = vmul.f32 %v960, %v766
        %v1090 = vmul.f32 %v965, %v772
        %v1091 = vmul.f32 %v970, %v776
        %v1092 = vmul.f32 %v975, %v782
        %v1093 = vmul.f32 %v980, %v786
        %v1094 = vmul.f32 %v985, %v792
        %v1095 = vmul.f32 %v990, %v796
        %v1096 = vmul.f32 %v995, %v802
        %v1097 = vmul.f32 %v1000, %v806
        %v1098 = vmul.f32 %v1005, %v812
        %v1099 = vmul.f32 %v1010, %v816
        %v1100 = vmul.f32 %v1015, %v822
        %v1101 = vmul.f32 %v1020, %v826
        %v1102 = vmul.f32 %v1025, %v832
        %v1103 = vmul.f32 %v1030, %v836
        %v1104 = vmul.f32 %v1035, %v842
        %v1105 = vmul.f32 %v1040, %v846
        %v1106 = vmul.f32 %v1045, %v852
        %v1107 = vmul.f32 %v1050, %v856
        %v1108 = vmul.f32 %v1055, %v862
        %v1109 = vmul.f32 %v1060, %v866
        %v1110 = vmul.f32 %v1065, %v872
        %v1111 = vmul.f32 %v1070, %v876
        %v1112 = vmul.f32 %v1075, %v882
        %v1113 = vmul.f32 %v1080, %v886
        %v1114 = vld [vmem:[#allocation7] sm:$0xff]
        %v1115 = vld [vmem:[#allocation7 + $0x8] sm:$0xff]
        %v1116 = vld [vmem:[#allocation7 + $0x10] sm:$0xff]
        %v1117 = vld [vmem:[#allocation7 + $0x18] sm:$0xff]
        %v1118 = vld [vmem:[#allocation7 + $0x20] sm:$0xff]
        %v1119 = vld [vmem:[#allocation7 + $0x28] sm:$0xff]
        %v1120 = vld [vmem:[#allocation7 + $0x30] sm:$0xff]
        %v1121 = vld [vmem:[#allocation7 + $0x38] sm:$0xff]
        %v1122 = vld [vmem:[#allocation7 + $0x40] sm:$0xff]
        %v1123 = vld [vmem:[#allocation7 + $0x48] sm:$0xff]
        %v1124 = vld [vmem:[#allocation7 + $0x50] sm:$0xff]
        %v1125 = vld [vmem:[#allocation7 + $0x58] sm:$0xff]
        %v1126 = vld [vmem:[#allocation7 + $0x60] sm:$0xff]
        %v1127 = vld [vmem:[#allocation7 + $0x68] sm:$0xff]
        %v1128 = vld [vmem:[#allocation7 + $0x70] sm:$0xff]
        %v1129 = vld [vmem:[#allocation7 + $0x78] sm:$0xff]
        %v1130 = vld [vmem:[#allocation7 + $0x80] sm:$0xff]
        %v1131 = vld [vmem:[#allocation7 + $0x88] sm:$0xff]
        %v1132 = vld [vmem:[#allocation7 + $0x90] sm:$0xff]
        %v1133 = vld [vmem:[#allocation7 + $0x98] sm:$0xff]
        %v1134 = vld [vmem:[#allocation7 + $0xa0] sm:$0xff]
        %v1135 = vld [vmem:[#allocation7 + $0xa8] sm:$0xff]
        %v1136 = vld [vmem:[#allocation7 + $0xb0] sm:$0xff]
        %v1137 = vld [vmem:[#allocation7 + $0xb8] sm:$0xff]
        %v1138 = vld [vmem:[#allocation7 + $0xc0] sm:$0xff]
        %v1139 = vld [vmem:[#allocation7 + $0xc8] sm:$0xff]
        %v1140 = vld [vmem:[#allocation7 + $0xd0] sm:$0xff]
        %v1141 = vld [vmem:[#allocation7 + $0xd8] sm:$0xff]
        %v1142 = vld [vmem:[#allocation7 + $0xe0] sm:$0xff]
        %v1143 = vld [vmem:[#allocation7 + $0xe8] sm:$0xff]
        %v1144 = vld [vmem:[#allocation7 + $0xf0] sm:$0xff]
        %v1145 = vld [vmem:[#allocation7 + $0xf8] sm:$0xff]
        %v1146 = vpack.c.bf16 %v738, %v734
        %v1147 = vpack.c.bf16 %v748, %v744
        %v1148 = vpack.c.bf16 %v758, %v754
        %v1149 = vpack.c.bf16 %v768, %v764
        %v1150 = vpack.c.bf16 %v778, %v774
        %v1151 = vpack.c.bf16 %v788, %v784
        %v1152 = vpack.c.bf16 %v798, %v794
        %v1153 = vpack.c.bf16 %v808, %v804
        %v1154 = vpack.c.bf16 %v818, %v814
        %v1155 = vpack.c.bf16 %v828, %v824
        %v1156 = vpack.c.bf16 %v838, %v834
        %v1157 = vpack.c.bf16 %v848, %v844
        %v1158 = vpack.c.bf16 %v858, %v854
        %v1159 = vpack.c.bf16 %v868, %v864
        %v1160 = vpack.c.bf16 %v878, %v874
        %v1161 = vpack.c.bf16 %v888, %v884
        %v1194 = vunpack.c.l.b16 %v1114
        %v1195 = vunpack.c.h.b16 %v1114
        %v1196 = vunpack.c.l.b16 %v1115
        %v1197 = vunpack.c.h.b16 %v1115
        %v1198 = vunpack.c.l.b16 %v1116
        %v1199 = vunpack.c.h.b16 %v1116
        %v1200 = vunpack.c.l.b16 %v1117
        %v1201 = vunpack.c.h.b16 %v1117
        %v1202 = vunpack.c.l.b16 %v1118
        %v1203 = vunpack.c.h.b16 %v1118
        %v1204 = vunpack.c.l.b16 %v1119
        %v1205 = vunpack.c.h.b16 %v1119
        %v1206 = vunpack.c.l.b16 %v1120
        %v1207 = vunpack.c.h.b16 %v1120
        %v1208 = vunpack.c.l.b16 %v1121
        %v1209 = vunpack.c.h.b16 %v1121
        %v1210 = vunpack.c.l.b16 %v1122
        %v1211 = vunpack.c.h.b16 %v1122
        %v1212 = vunpack.c.l.b16 %v1123
        %v1213 = vunpack.c.h.b16 %v1123
        %v1214 = vunpack.c.l.b16 %v1124
        %v1215 = vunpack.c.h.b16 %v1124
        %v1216 = vunpack.c.l.b16 %v1125
        %v1217 = vunpack.c.h.b16 %v1125
        %v1218 = vunpack.c.l.b16 %v1126
        %v1219 = vunpack.c.h.b16 %v1126
        %v1220 = vunpack.c.l.b16 %v1127
        %v1221 = vunpack.c.h.b16 %v1127
        %v1222 = vunpack.c.l.b16 %v1128
        %v1223 = vunpack.c.h.b16 %v1128
        %v1224 = vunpack.c.l.b16 %v1129
        %v1225 = vunpack.c.h.b16 %v1129
        %v1226 = vunpack.c.l.b16 %v1130
        %v1227 = vunpack.c.h.b16 %v1130
        %v1228 = vunpack.c.l.b16 %v1131
        %v1229 = vunpack.c.h.b16 %v1131
        %v1230 = vunpack.c.l.b16 %v1132
        %v1231 = vunpack.c.h.b16 %v1132
        %v1232 = vunpack.c.l.b16 %v1133
        %v1233 = vunpack.c.h.b16 %v1133
        %v1234 = vunpack.c.l.b16 %v1134
        %v1235 = vunpack.c.h.b16 %v1134
        %v1236 = vunpack.c.l.b16 %v1135
        %v1237 = vunpack.c.h.b16 %v1135
        %v1238 = vunpack.c.l.b16 %v1136
        %v1239 = vunpack.c.h.b16 %v1136
        %v1240 = vunpack.c.l.b16 %v1137
        %v1241 = vunpack.c.h.b16 %v1137
        %v1242 = vunpack.c.l.b16 %v1138
        %v1243 = vunpack.c.h.b16 %v1138
        %v1244 = vunpack.c.l.b16 %v1139
        %v1245 = vunpack.c.h.b16 %v1139
        %v1246 = vunpack.c.l.b16 %v1140
        %v1247 = vunpack.c.h.b16 %v1140
        %v1248 = vunpack.c.l.b16 %v1141
        %v1249 = vunpack.c.h.b16 %v1141
        %v1250 = vunpack.c.l.b16 %v1142
        %v1251 = vunpack.c.h.b16 %v1142
        %v1252 = vunpack.c.l.b16 %v1143
        %v1253 = vunpack.c.h.b16 %v1143
        %v1254 = vunpack.c.l.b16 %v1144
        %v1255 = vunpack.c.h.b16 %v1144
        %v1256 = vunpack.c.l.b16 %v1145
        %v1257 = vunpack.c.h.b16 %v1145
        %v1258 = vpack.c.b16 %v1196, %v1194
        %v1259 = vpack.c.b16 %v1197, %v1195
        %v1260 = vpack.c.b16 %v1200, %v1198
        %v1261 = vpack.c.b16 %v1201, %v1199
        %v1262 = vpack.c.b16 %v1204, %v1202
        %v1263 = vpack.c.b16 %v1205, %v1203
        %v1264 = vpack.c.b16 %v1208, %v1206
        %v1265 = vpack.c.b16 %v1209, %v1207
        %v1266 = vpack.c.b16 %v1212, %v1210
        %v1267 = vpack.c.b16 %v1213, %v1211
        %v1268 = vpack.c.b16 %v1216, %v1214
        %v1269 = vpack.c.b16 %v1217, %v1215
        %v1270 = vpack.c.b16 %v1220, %v1218
        %v1271 = vpack.c.b16 %v1221, %v1219
        %v1272 = vpack.c.b16 %v1224, %v1222
        %v1273 = vpack.c.b16 %v1225, %v1223
        %v1274 = vpack.c.b16 %v1228, %v1226
        %v1275 = vpack.c.b16 %v1229, %v1227
        %v1276 = vpack.c.b16 %v1232, %v1230
        %v1277 = vpack.c.b16 %v1233, %v1231
        %v1278 = vpack.c.b16 %v1236, %v1234
        %v1279 = vpack.c.b16 %v1237, %v1235
        %v1280 = vpack.c.b16 %v1240, %v1238
        %v1281 = vpack.c.b16 %v1241, %v1239
        %v1282 = vpack.c.b16 %v1244, %v1242
        %v1283 = vpack.c.b16 %v1245, %v1243
        %v1284 = vpack.c.b16 %v1248, %v1246
        %v1285 = vpack.c.b16 %v1249, %v1247
        %v1286 = vpack.c.b16 %v1252, %v1250
        %v1287 = vpack.c.b16 %v1253, %v1251
        %v1288 = vpack.c.b16 %v1256, %v1254
        %v1289 = vpack.c.b16 %v1257, %v1255
        %1322 = vmatprep.subr.bf16.mxu0 0
        %1323 = vmatpush1.bf16.msra.mxu0 %v1153
        %1324 = vmatprep.subr.bf16.mxu0 0
        %1325 = vmatpush1.bf16.msra.mxu0 %v1152
        %1326 = vmatprep.subr.bf16.mxu0 0
        %1327 = vmatpush1.bf16.msra.mxu0 %v1151
        %1328 = vmatprep.subr.bf16.mxu0 0
        %1329 = vmatpush1.bf16.msra.mxu0 %v1150
        %1330 = vmatprep.subr.bf16.mxu0 0
        %1331 = vmatpush1.bf16.msra.mxu0 %v1149
        %1332 = vmatprep.subr.bf16.mxu0 0
        %1333 = vmatpush1.bf16.msra.mxu0 %v1148
        %1334 = vmatprep.subr.bf16.mxu0 0
        %1335 = vmatpush1.bf16.msra.mxu0 %v1147
        %1336 = vmatprep.subr.bf16.mxu0 0
        %1337 = vmatpush1.bf16.msra.mxu0 %v1146
        %1338 = vmatprep.subr.bf16.mxu0 0
        %1339 = vmatpush2.bf16.msra.mxu0 %v1161
        %1340 = vmatprep.subr.bf16.mxu0 0
        %1341 = vmatpush2.bf16.msra.mxu0 %v1160
        %1342 = vmatprep.subr.bf16.mxu0 0
        %1343 = vmatpush2.bf16.msra.mxu0 %v1159
        %1344 = vmatprep.subr.bf16.mxu0 0
        %1345 = vmatpush2.bf16.msra.mxu0 %v1158
        %1346 = vmatprep.subr.bf16.mxu0 0
        %1347 = vmatpush2.bf16.msra.mxu0 %v1157
        %1348 = vmatprep.subr.bf16.mxu0 0
        %1349 = vmatpush2.bf16.msra.mxu0 %v1156
        %1350 = vmatprep.subr.bf16.mxu0 0
        %1351 = vmatpush2.bf16.msra.mxu0 %v1155
        %1352 = vmatprep.subr.bf16.mxu0 0
        %1353 = vmatpush2.bf16.msra.mxu0 %v1154
        %1354 = vmatprep.mubr.bf16.mxu0 %v1259
        %1355 = vmatmul.mubr.bf16.gmra.mxu0 %v1258
        %v1356 = vpop.f32.mrf.mxu0
        %v1357 = vadd.f32 0.0, %v1356
        %v1358 = vpop.f32.mrf.mxu0
        %v1359 = vpop.f32.mrf.mxu0
        %v1360 = vadd.f32 0.0, %v1359
        %v1361 = vpop.f32.mrf.mxu0
        %1362 = vmatprep.mubr.bf16.mxu0 %v1261
        %1363 = vmatmul.mubr.bf16.gmra.mxu0 %v1260
        %v1364 = vpop.f32.mrf.mxu0
        %v1365 = vadd.f32 0.0, %v1364
        %v1366 = vpop.f32.mrf.mxu0
        %v1367 = vpop.f32.mrf.mxu0
        %v1368 = vadd.f32 0.0, %v1367
        %v1369 = vpop.f32.mrf.mxu0
        %1370 = vmatprep.mubr.bf16.mxu0 %v1263
        %1371 = vmatmul.mubr.bf16.gmra.mxu0 %v1262
        %v1372 = vpop.f32.mrf.mxu0
        %v1373 = vadd.f32 0.0, %v1372
        %v1374 = vpop.f32.mrf.mxu0
        %v1375 = vpop.f32.mrf.mxu0
        %v1376 = vadd.f32 0.0, %v1375
        %v1377 = vpop.f32.mrf.mxu0
        %1378 = vmatprep.mubr.bf16.mxu0 %v1265
        %1379 = vmatmul.mubr.bf16.gmra.mxu0 %v1264
        %v1380 = vpop.f32.mrf.mxu0
        %v1381 = vadd.f32 0.0, %v1380
        %v1382 = vpop.f32.mrf.mxu0
        %v1383 = vpop.f32.mrf.mxu0
        %v1384 = vadd.f32 0.0, %v1383
        %v1385 = vpop.f32.mrf.mxu0
        %1386 = vmatprep.mubr.bf16.mxu0 %v1267
        %1387 = vmatmul.mubr.bf16.gmra.mxu0 %v1266
        %v1388 = vpop.f32.mrf.mxu0
        %v1389 = vadd.f32 0.0, %v1388
        %v1390 = vpop.f32.mrf.mxu0
        %v1391 = vpop.f32.mrf.mxu0
        %v1392 = vadd.f32 0.0, %v1391
        %v1393 = vpop.f32.mrf.mxu0
        %1394 = vmatprep.mubr.bf16.mxu0 %v1269
        %1395 = vmatmul.mubr.bf16.gmra.mxu0 %v1268
        %v1396 = vpop.f32.mrf.mxu0
        %v1397 = vadd.f32 0.0, %v1396
        %v1398 = vpop.f32.mrf.mxu0
        %v1399 = vpop.f32.mrf.mxu0
        %v1400 = vadd.f32 0.0, %v1399
        %v1401 = vpop.f32.mrf.mxu0
        %1402 = vmatprep.mubr.bf16.mxu0 %v1271
        %1403 = vmatmul.mubr.bf16.gmra.mxu0 %v1270
        %v1404 = vpop.f32.mrf.mxu0
        %v1405 = vadd.f32 0.0, %v1404
        %v1406 = vpop.f32.mrf.mxu0
        %v1407 = vpop.f32.mrf.mxu0
        %v1408 = vadd.f32 0.0, %v1407
        %v1409 = vpop.f32.mrf.mxu0
        %1410 = vmatprep.mubr.bf16.mxu0 %v1273
        %1411 = vmatmul.mubr.bf16.gmra.mxu0 %v1272
        %v1412 = vpop.f32.mrf.mxu0
        %v1413 = vadd.f32 0.0, %v1412
        %v1414 = vpop.f32.mrf.mxu0
        %v1415 = vpop.f32.mrf.mxu0
        %v1416 = vadd.f32 0.0, %v1415
        %v1417 = vpop.f32.mrf.mxu0
        %1418 = vmatprep.mubr.bf16.mxu0 %v1275
        %1419 = vmatmul.mubr.bf16.gmra.mxu0 %v1274
        %v1420 = vpop.f32.mrf.mxu0
        %v1421 = vadd.f32 0.0, %v1420
        %v1422 = vpop.f32.mrf.mxu0
        %v1423 = vpop.f32.mrf.mxu0
        %v1424 = vadd.f32 0.0, %v1423
        %v1425 = vpop.f32.mrf.mxu0
        %1426 = vmatprep.mubr.bf16.mxu0 %v1277
        %1427 = vmatmul.mubr.bf16.gmra.mxu0 %v1276
        %v1428 = vpop.f32.mrf.mxu0
        %v1429 = vadd.f32 0.0, %v1428
        %v1430 = vpop.f32.mrf.mxu0
        %v1431 = vpop.f32.mrf.mxu0
        %v1432 = vadd.f32 0.0, %v1431
        %v1433 = vpop.f32.mrf.mxu0
        %1434 = vmatprep.mubr.bf16.mxu0 %v1279
        %1435 = vmatmul.mubr.bf16.gmra.mxu0 %v1278
        %v1436 = vpop.f32.mrf.mxu0
        %v1437 = vadd.f32 0.0, %v1436
        %v1438 = vpop.f32.mrf.mxu0
        %v1439 = vpop.f32.mrf.mxu0
        %v1440 = vadd.f32 0.0, %v1439
        %v1441 = vpop.f32.mrf.mxu0
        %1442 = vmatprep.mubr.bf16.mxu0 %v1281
        %1443 = vmatmul.mubr.bf16.gmra.mxu0 %v1280
        %v1444 = vpop.f32.mrf.mxu0
        %v1445 = vadd.f32 0.0, %v1444
        %v1446 = vpop.f32.mrf.mxu0
        %v1447 = vpop.f32.mrf.mxu0
        %v1448 = vadd.f32 0.0, %v1447
        %v1449 = vpop.f32.mrf.mxu0
        %1450 = vmatprep.mubr.bf16.mxu0 %v1283
        %1451 = vmatmul.mubr.bf16.gmra.mxu0 %v1282
        %v1452 = vpop.f32.mrf.mxu0
        %v1453 = vadd.f32 0.0, %v1452
        %v1454 = vpop.f32.mrf.mxu0
        %v1455 = vpop.f32.mrf.mxu0
        %v1456 = vadd.f32 0.0, %v1455
        %v1457 = vpop.f32.mrf.mxu0
        %1458 = vmatprep.mubr.bf16.mxu0 %v1285
        %1459 = vmatmul.mubr.bf16.gmra.mxu0 %v1284
        %v1460 = vpop.f32.mrf.mxu0
        %v1461 = vadd.f32 0.0, %v1460
        %v1462 = vpop.f32.mrf.mxu0
        %v1463 = vpop.f32.mrf.mxu0
        %v1464 = vadd.f32 0.0, %v1463
        %v1465 = vpop.f32.mrf.mxu0
        %1466 = vmatprep.mubr.bf16.mxu0 %v1287
        %1467 = vmatmul.mubr.bf16.gmra.mxu0 %v1286
        %v1468 = vpop.f32.mrf.mxu0
        %v1469 = vadd.f32 0.0, %v1468
        %v1470 = vpop.f32.mrf.mxu0
        %v1471 = vpop.f32.mrf.mxu0
        %v1472 = vadd.f32 0.0, %v1471
        %v1473 = vpop.f32.mrf.mxu0
        %1474 = vmatprep.mubr.bf16.mxu0 %v1289
        %1475 = vmatmul.mubr.bf16.gmra.mxu0 %v1288
        %v1476 = vpop.f32.mrf.mxu0
        %v1477 = vadd.f32 0.0, %v1476
        %v1478 = vpop.f32.mrf.mxu0
        %v1479 = vpop.f32.mrf.mxu0
        %v1480 = vadd.f32 0.0, %v1479
        %v1481 = vpop.f32.mrf.mxu0
        %1482 = vdwg.mxu0
        %v1483 = vadd.f32 %v1082, %v1357
        %v1484 = vadd.f32 %v1083, %v1360
        %v1485 = vadd.f32 %v1084, %v1365
        %v1486 = vadd.f32 %v1085, %v1368
        %v1487 = vadd.f32 %v1086, %v1373
        %v1488 = vadd.f32 %v1087, %v1376
        %v1489 = vadd.f32 %v1088, %v1381
        %v1490 = vadd.f32 %v1089, %v1384
        %v1491 = vadd.f32 %v1090, %v1389
        %v1492 = vadd.f32 %v1091, %v1392
        %v1493 = vadd.f32 %v1092, %v1397
        %v1494 = vadd.f32 %v1093, %v1400
        %v1495 = vadd.f32 %v1094, %v1405
        %v1496 = vadd.f32 %v1095, %v1408
        %v1497 = vadd.f32 %v1096, %v1413
        %v1498 = vadd.f32 %v1097, %v1416
        %v1499 = vadd.f32 %v1098, %v1421
        %v1500 = vadd.f32 %v1099, %v1424
        %v1501 = vadd.f32 %v1100, %v1429
        %v1502 = vadd.f32 %v1101, %v1432
        %v1503 = vadd.f32 %v1102, %v1437
        %v1504 = vadd.f32 %v1103, %v1440
        %v1505 = vadd.f32 %v1104, %v1445
        %v1506 = vadd.f32 %v1105, %v1448
        %v1507 = vadd.f32 %v1106, %v1453
        %v1508 = vadd.f32 %v1107, %v1456
        %v1509 = vadd.f32 %v1108, %v1461
        %v1510 = vadd.f32 %v1109, %v1464
        %v1511 = vadd.f32 %v1110, %v1469
        %v1512 = vadd.f32 %v1111, %v1472
        %v1513 = vadd.f32 %v1112, %v1477
        %v1514 = vadd.f32 %v1113, %v1480
        %v1515 = vld [vmem:[%s4] sm:$0x1]
        %v1517 = vlaneseq
        %v1518 = vshrl.u32 %v1517, 7
        %v1519 = vsub.s32 0, %v1518
        %v1520 = vrot.slane %v1515, %v1519
        %v1522 = vadd.f32 %v1483, %v1520
        %v1523 = vadd.f32 %v1484, %v1520
        %v1524 = vadd.f32 %v1485, %v1520
        %v1525 = vadd.f32 %v1486, %v1520
        %v1526 = vadd.f32 %v1487, %v1520
        %v1527 = vadd.f32 %v1488, %v1520
        %v1528 = vadd.f32 %v1489, %v1520
        %v1529 = vadd.f32 %v1490, %v1520
        %v1530 = vadd.f32 %v1491, %v1520
        %v1531 = vadd.f32 %v1492, %v1520
        %v1532 = vadd.f32 %v1493, %v1520
        %v1533 = vadd.f32 %v1494, %v1520
        %v1534 = vadd.f32 %v1495, %v1520
        %v1535 = vadd.f32 %v1496, %v1520
        %v1536 = vadd.f32 %v1497, %v1520
        %v1537 = vadd.f32 %v1498, %v1520
        %v1538 = vadd.f32 %v1499, %v1520
        %v1539 = vadd.f32 %v1500, %v1520
        %v1540 = vadd.f32 %v1501, %v1520
        %v1541 = vadd.f32 %v1502, %v1520
        %v1542 = vadd.f32 %v1503, %v1520
        %v1543 = vadd.f32 %v1504, %v1520
        %v1544 = vadd.f32 %v1505, %v1520
        %v1545 = vadd.f32 %v1506, %v1520
        %v1546 = vadd.f32 %v1507, %v1520
        %v1547 = vadd.f32 %v1508, %v1520
        %v1548 = vadd.f32 %v1509, %v1520
        %v1549 = vadd.f32 %v1510, %v1520
        %v1550 = vadd.f32 %v1511, %v1520
        %v1551 = vadd.f32 %v1512, %v1520
        %v1552 = vadd.f32 %v1513, %v1520
        %v1553 = vadd.f32 %v1514, %v1520
        %v1554 = vmax.f32 %v1522, 0.0
        %v1555 = vmax.f32 %v1523, 0.0
        %v1556 = vmax.f32 %v1524, 0.0
        %v1557 = vmax.f32 %v1525, 0.0
        %v1558 = vmax.f32 %v1526, 0.0
        %v1559 = vmax.f32 %v1527, 0.0
        %v1560 = vmax.f32 %v1528, 0.0
        %v1561 = vmax.f32 %v1529, 0.0
        %v1562 = vmax.f32 %v1530, 0.0
        %v1563 = vmax.f32 %v1531, 0.0
        %v1564 = vmax.f32 %v1532, 0.0
        %v1565 = vmax.f32 %v1533, 0.0
        %v1566 = vmax.f32 %v1534, 0.0
        %v1567 = vmax.f32 %v1535, 0.0
        %v1568 = vmax.f32 %v1536, 0.0
        %v1569 = vmax.f32 %v1537, 0.0
        %v1570 = vmax.f32 %v1538, 0.0
        %v1571 = vmax.f32 %v1539, 0.0
        %v1572 = vmax.f32 %v1540, 0.0
        %v1573 = vmax.f32 %v1541, 0.0
        %v1574 = vmax.f32 %v1542, 0.0
        %v1575 = vmax.f32 %v1543, 0.0
        %v1576 = vmax.f32 %v1544, 0.0
        %v1577 = vmax.f32 %v1545, 0.0
        %v1578 = vmax.f32 %v1546, 0.0
        %v1579 = vmax.f32 %v1547, 0.0
        %v1580 = vmax.f32 %v1548, 0.0
        %v1581 = vmax.f32 %v1549, 0.0
        %v1582 = vmax.f32 %v1550, 0.0
        %v1583 = vmax.f32 %v1551, 0.0
        %v1584 = vmax.f32 %v1552, 0.0
        %v1585 = vmax.f32 %v1553, 0.0
        %v1586 = vpack.c.bf16 %v1555, %v1554
        %v1587 = vpack.c.bf16 %v1557, %v1556
        %v1588 = vpack.c.bf16 %v1559, %v1558
        %v1589 = vpack.c.bf16 %v1561, %v1560
        %v1590 = vpack.c.bf16 %v1563, %v1562
        %v1591 = vpack.c.bf16 %v1565, %v1564
        %v1592 = vpack.c.bf16 %v1567, %v1566
        %v1593 = vpack.c.bf16 %v1569, %v1568
        %v1594 = vpack.c.bf16 %v1571, %v1570
        %v1595 = vpack.c.bf16 %v1573, %v1572
        %v1596 = vpack.c.bf16 %v1575, %v1574
        %v1597 = vpack.c.bf16 %v1577, %v1576
        %v1598 = vpack.c.bf16 %v1579, %v1578
        %v1599 = vpack.c.bf16 %v1581, %v1580
        %v1600 = vpack.c.bf16 %v1583, %v1582
        %v1601 = vpack.c.bf16 %v1585, %v1584
        %v1602 = vld [vmem:[#allocation13] sm:$0xff]
        %v1603 = vld [vmem:[#allocation13 + $0x8] sm:$0xff]
        %v1604 = vld [vmem:[#allocation13 + $0x10] sm:$0xff]
        %v1605 = vld [vmem:[#allocation13 + $0x18] sm:$0xff]
        %v1606 = vld [vmem:[#allocation13 + $0x20] sm:$0xff]
        %v1607 = vld [vmem:[#allocation13 + $0x28] sm:$0xff]
        %v1608 = vld [vmem:[#allocation13 + $0x30] sm:$0xff]
        %v1609 = vld [vmem:[#allocation13 + $0x38] sm:$0xff]
        %v1610 = vld [vmem:[#allocation13 + $0x40] sm:$0xff]
        %v1611 = vld [vmem:[#allocation13 + $0x48] sm:$0xff]
        %v1612 = vld [vmem:[#allocation13 + $0x50] sm:$0xff]
        %v1613 = vld [vmem:[#allocation13 + $0x58] sm:$0xff]
        %v1614 = vld [vmem:[#allocation13 + $0x60] sm:$0xff]
        %v1615 = vld [vmem:[#allocation13 + $0x68] sm:$0xff]
        %v1616 = vld [vmem:[#allocation13 + $0x70] sm:$0xff]
        %v1617 = vld [vmem:[#allocation13 + $0x78] sm:$0xff]
        %v1634 = vunpack.c.l.b16 %v1602
        %v1635 = vunpack.c.h.b16 %v1602
        %v1636 = vunpack.c.l.b16 %v1603
        %v1637 = vunpack.c.h.b16 %v1603
        %v1638 = vunpack.c.l.b16 %v1604
        %v1639 = vunpack.c.h.b16 %v1604
        %v1640 = vunpack.c.l.b16 %v1605
        %v1641 = vunpack.c.h.b16 %v1605
        %v1642 = vunpack.c.l.b16 %v1606
        %v1643 = vunpack.c.h.b16 %v1606
        %v1644 = vunpack.c.l.b16 %v1607
        %v1645 = vunpack.c.h.b16 %v1607
        %v1646 = vunpack.c.l.b16 %v1608
        %v1647 = vunpack.c.h.b16 %v1608
        %v1648 = vunpack.c.l.b16 %v1609
        %v1649 = vunpack.c.h.b16 %v1609
        %v1650 = vunpack.c.l.b16 %v1610
        %v1651 = vunpack.c.h.b16 %v1610
        %v1652 = vunpack.c.l.b16 %v1611
        %v1653 = vunpack.c.h.b16 %v1611
        %v1654 = vunpack.c.l.b16 %v1612
        %v1655 = vunpack.c.h.b16 %v1612
        %v1656 = vunpack.c.l.b16 %v1613
        %v1657 = vunpack.c.h.b16 %v1613
        %v1658 = vunpack.c.l.b16 %v1614
        %v1659 = vunpack.c.h.b16 %v1614
        %v1660 = vunpack.c.l.b16 %v1615
        %v1661 = vunpack.c.h.b16 %v1615
        %v1662 = vunpack.c.l.b16 %v1616
        %v1663 = vunpack.c.h.b16 %v1616
        %v1664 = vunpack.c.l.b16 %v1617
        %v1665 = vunpack.c.h.b16 %v1617
        %v1666 = vpack.c.b16 %v1636, %v1634
        %v1667 = vpack.c.b16 %v1637, %v1635
        %v1668 = vpack.c.b16 %v1640, %v1638
        %v1669 = vpack.c.b16 %v1641, %v1639
        %v1670 = vpack.c.b16 %v1644, %v1642
        %v1671 = vpack.c.b16 %v1645, %v1643
        %v1672 = vpack.c.b16 %v1648, %v1646
        %v1673 = vpack.c.b16 %v1649, %v1647
        %v1674 = vpack.c.b16 %v1652, %v1650
        %v1675 = vpack.c.b16 %v1653, %v1651
        %v1676 = vpack.c.b16 %v1656, %v1654
        %v1677 = vpack.c.b16 %v1657, %v1655
        %v1678 = vpack.c.b16 %v1660, %v1658
        %v1679 = vpack.c.b16 %v1661, %v1659
        %v1680 = vpack.c.b16 %v1664, %v1662
        %v1681 = vpack.c.b16 %v1665, %v1663
        %1698 = vmatprep.subr.bf16.mxu0 %v1681
        %1699 = vmatpush1.bf16.msra.mxu0 %v1680
        %1700 = vmatprep.subr.bf16.mxu0 %v1679
        %1701 = vmatpush1.bf16.msra.mxu0 %v1678
        %1702 = vmatprep.subr.bf16.mxu0 %v1677
        %1703 = vmatpush1.bf16.msra.mxu0 %v1676
        %1704 = vmatprep.subr.bf16.mxu0 %v1675
        %1705 = vmatpush1.bf16.msra.mxu0 %v1674
        %1706 = vmatprep.subr.bf16.mxu0 %v1673
        %1707 = vmatpush1.bf16.msra.mxu0 %v1672
        %1708 = vmatprep.subr.bf16.mxu0 %v1671
        %1709 = vmatpush1.bf16.msra.mxu0 %v1670
        %1710 = vmatprep.subr.bf16.mxu0 %v1669
        %1711 = vmatpush1.bf16.msra.mxu0 %v1668
        %1712 = vmatprep.subr.bf16.mxu0 %v1667
        %1713 = vmatpush1.bf16.msra.mxu0 %v1666
        %1714 = vmatprep.subr.bf16.mxu0 0
        %1715 = vmatpush2.bf16.msra.mxu0 0
        %1716 = vmatprep.subr.bf16.mxu0 0
        %1717 = vmatpush2.bf16.msra.mxu0 0
        %1718 = vmatprep.subr.bf16.mxu0 0
        %1719 = vmatpush2.bf16.msra.mxu0 0
        %1720 = vmatprep.subr.bf16.mxu0 0
        %1721 = vmatpush2.bf16.msra.mxu0 0
        %1722 = vmatprep.subr.bf16.mxu0 0
        %1723 = vmatpush2.bf16.msra.mxu0 0
        %1724 = vmatprep.subr.bf16.mxu0 0
        %1725 = vmatpush2.bf16.msra.mxu0 0
        %1726 = vmatprep.subr.bf16.mxu0 0
        %1727 = vmatpush2.bf16.msra.mxu0 0
        %1728 = vmatprep.subr.bf16.mxu0 0
        %1729 = vmatpush2.bf16.msra.mxu0 0
        %1730 = vmatprep.mubr.bf16.mxu0 0
        %1731 = vmatmul.mubr.bf16.gmra.mxu0 %v1586
        %v1732 = vpop.f32.mrf.mxu0
        %v1733 = vadd.f32 0.0, %v1732
        %v1734 = vpop.f32.mrf.mxu0
        %v1735 = vadd.f32 0.0, %v1734
        %v1736 = vpop.f32.mrf.mxu0
        %v1737 = vadd.f32 0.0, %v1736
        %v1738 = vpop.f32.mrf.mxu0
        %v1739 = vadd.f32 0.0, %v1738
        %1740 = vmatprep.mubr.bf16.mxu0 0
        %1741 = vmatmul.mubr.bf16.gmra.mxu0 %v1587
        %v1742 = vpop.f32.mrf.mxu0
        %v1743 = vadd.f32 0.0, %v1742
        %v1744 = vpop.f32.mrf.mxu0
        %v1745 = vadd.f32 0.0, %v1744
        %v1746 = vpop.f32.mrf.mxu0
        %v1747 = vadd.f32 0.0, %v1746
        %v1748 = vpop.f32.mrf.mxu0
        %v1749 = vadd.f32 0.0, %v1748
        %1750 = vmatprep.mubr.bf16.mxu0 0
        %1751 = vmatmul.mubr.bf16.gmra.mxu0 %v1588
        %v1752 = vpop.f32.mrf.mxu0
        %v1753 = vadd.f32 0.0, %v1752
        %v1754 = vpop.f32.mrf.mxu0
        %v1755 = vadd.f32 0.0, %v1754
        %v1756 = vpop.f32.mrf.mxu0
        %v1757 = vadd.f32 0.0, %v1756
        %v1758 = vpop.f32.mrf.mxu0
        %v1759 = vadd.f32 0.0, %v1758
        %1760 = vmatprep.mubr.bf16.mxu0 0
        %1761 = vmatmul.mubr.bf16.gmra.mxu0 %v1589
        %v1762 = vpop.f32.mrf.mxu0
        %v1763 = vadd.f32 0.0, %v1762
        %v1764 = vpop.f32.mrf.mxu0
        %v1765 = vadd.f32 0.0, %v1764
        %v1766 = vpop.f32.mrf.mxu0
        %v1767 = vadd.f32 0.0, %v1766
        %v1768 = vpop.f32.mrf.mxu0
        %v1769 = vadd.f32 0.0, %v1768
        %1770 = vmatprep.mubr.bf16.mxu0 0
        %1771 = vmatmul.mubr.bf16.gmra.mxu0 %v1590
        %v1772 = vpop.f32.mrf.mxu0
        %v1773 = vadd.f32 0.0, %v1772
        %v1774 = vpop.f32.mrf.mxu0
        %v1775 = vadd.f32 0.0, %v1774
        %v1776 = vpop.f32.mrf.mxu0
        %v1777 = vadd.f32 0.0, %v1776
        %v1778 = vpop.f32.mrf.mxu0
        %v1779 = vadd.f32 0.0, %v1778
        %1780 = vmatprep.mubr.bf16.mxu0 0
        %1781 = vmatmul.mubr.bf16.gmra.mxu0 %v1591
        %v1782 = vpop.f32.mrf.mxu0
        %v1783 = vadd.f32 0.0, %v1782
        %v1784 = vpop.f32.mrf.mxu0
        %v1785 = vadd.f32 0.0, %v1784
        %v1786 = vpop.f32.mrf.mxu0
        %v1787 = vadd.f32 0.0, %v1786
        %v1788 = vpop.f32.mrf.mxu0
        %v1789 = vadd.f32 0.0, %v1788
        %1790 = vmatprep.mubr.bf16.mxu0 0
        %1791 = vmatmul.mubr.bf16.gmra.mxu0 %v1592
        %v1792 = vpop.f32.mrf.mxu0
        %v1793 = vadd.f32 0.0, %v1792
        %v1794 = vpop.f32.mrf.mxu0
        %v1795 = vadd.f32 0.0, %v1794
        %v1796 = vpop.f32.mrf.mxu0
        %v1797 = vadd.f32 0.0, %v1796
        %v1798 = vpop.f32.mrf.mxu0
        %v1799 = vadd.f32 0.0, %v1798
        %1800 = vmatprep.mubr.bf16.mxu0 0
        %1801 = vmatmul.mubr.bf16.gmra.mxu0 %v1593
        %v1802 = vpop.f32.mrf.mxu0
        %v1803 = vadd.f32 0.0, %v1802
        %v1804 = vpop.f32.mrf.mxu0
        %v1805 = vadd.f32 0.0, %v1804
        %v1806 = vpop.f32.mrf.mxu0
        %v1807 = vadd.f32 0.0, %v1806
        %v1808 = vpop.f32.mrf.mxu0
        %v1809 = vadd.f32 0.0, %v1808
        %1810 = vmatprep.mubr.bf16.mxu0 0
        %1811 = vmatmul.mubr.bf16.gmra.mxu0 %v1594
        %v1812 = vpop.f32.mrf.mxu0
        %v1813 = vadd.f32 0.0, %v1812
        %v1814 = vpop.f32.mrf.mxu0
        %v1815 = vadd.f32 0.0, %v1814
        %v1816 = vpop.f32.mrf.mxu0
        %v1817 = vadd.f32 0.0, %v1816
        %v1818 = vpop.f32.mrf.mxu0
        %v1819 = vadd.f32 0.0, %v1818
        %1820 = vmatprep.mubr.bf16.mxu0 0
        %1821 = vmatmul.mubr.bf16.gmra.mxu0 %v1595
        %v1822 = vpop.f32.mrf.mxu0
        %v1823 = vadd.f32 0.0, %v1822
        %v1824 = vpop.f32.mrf.mxu0
        %v1825 = vadd.f32 0.0, %v1824
        %v1826 = vpop.f32.mrf.mxu0
        %v1827 = vadd.f32 0.0, %v1826
        %v1828 = vpop.f32.mrf.mxu0
        %v1829 = vadd.f32 0.0, %v1828
        %1830 = vmatprep.mubr.bf16.mxu0 0
        %1831 = vmatmul.mubr.bf16.gmra.mxu0 %v1596
        %v1832 = vpop.f32.mrf.mxu0
        %v1833 = vadd.f32 0.0, %v1832
        %v1834 = vpop.f32.mrf.mxu0
        %v1835 = vadd.f32 0.0, %v1834
        %v1836 = vpop.f32.mrf.mxu0
        %v1837 = vadd.f32 0.0, %v1836
        %v1838 = vpop.f32.mrf.mxu0
        %v1839 = vadd.f32 0.0, %v1838
        %1840 = vmatprep.mubr.bf16.mxu0 0
        %1841 = vmatmul.mubr.bf16.gmra.mxu0 %v1597
        %v1842 = vpop.f32.mrf.mxu0
        %v1843 = vadd.f32 0.0, %v1842
        %v1844 = vpop.f32.mrf.mxu0
        %v1845 = vadd.f32 0.0, %v1844
        %v1846 = vpop.f32.mrf.mxu0
        %v1847 = vadd.f32 0.0, %v1846
        %v1848 = vpop.f32.mrf.mxu0
        %v1849 = vadd.f32 0.0, %v1848
        %1850 = vmatprep.mubr.bf16.mxu0 0
        %1851 = vmatmul.mubr.bf16.gmra.mxu0 %v1598
        %v1852 = vpop.f32.mrf.mxu0
        %v1853 = vadd.f32 0.0, %v1852
        %v1854 = vpop.f32.mrf.mxu0
        %v1855 = vadd.f32 0.0, %v1854
        %v1856 = vpop.f32.mrf.mxu0
        %v1857 = vadd.f32 0.0, %v1856
        %v1858 = vpop.f32.mrf.mxu0
        %v1859 = vadd.f32 0.0, %v1858
        %1860 = vmatprep.mubr.bf16.mxu0 0
        %1861 = vmatmul.mubr.bf16.gmra.mxu0 %v1599
        %v1862 = vpop.f32.mrf.mxu0
        %v1863 = vadd.f32 0.0, %v1862
        %v1864 = vpop.f32.mrf.mxu0
        %v1865 = vadd.f32 0.0, %v1864
        %v1866 = vpop.f32.mrf.mxu0
        %v1867 = vadd.f32 0.0, %v1866
        %v1868 = vpop.f32.mrf.mxu0
        %v1869 = vadd.f32 0.0, %v1868
        %1870 = vmatprep.mubr.bf16.mxu0 0
        %1871 = vmatmul.mubr.bf16.gmra.mxu0 %v1600
        %v1872 = vpop.f32.mrf.mxu0
        %v1873 = vadd.f32 0.0, %v1872
        %v1874 = vpop.f32.mrf.mxu0
        %v1875 = vadd.f32 0.0, %v1874
        %v1876 = vpop.f32.mrf.mxu0
        %v1877 = vadd.f32 0.0, %v1876
        %v1878 = vpop.f32.mrf.mxu0
        %v1879 = vadd.f32 0.0, %v1878
        %1880 = vmatprep.mubr.bf16.mxu0 0
        %1881 = vmatmul.mubr.bf16.gmra.mxu0 %v1601
        %v1882 = vpop.f32.mrf.mxu0
        %v1883 = vadd.f32 0.0, %v1882
        %v1884 = vpop.f32.mrf.mxu0
        %v1885 = vadd.f32 0.0, %v1884
        %v1886 = vpop.f32.mrf.mxu0
        %v1887 = vadd.f32 0.0, %v1886
        %v1888 = vpop.f32.mrf.mxu0
        %v1889 = vadd.f32 0.0, %v1888
        %1890 = vdwg.mxu0
        %v1891 = vld [vmem:[#allocation10] sm:$0xff]
        %v1892 = vld [vmem:[#allocation10 + $0x8] sm:$0xff]
        %v1893 = vld [vmem:[#allocation10 + $0x10] sm:$0xff]
        %v1894 = vld [vmem:[#allocation10 + $0x18] sm:$0xff]
        %v1895 = vld [vmem:[#allocation10 + $0x20] sm:$0xff]
        %v1896 = vld [vmem:[#allocation10 + $0x28] sm:$0xff]
        %v1897 = vld [vmem:[#allocation10 + $0x30] sm:$0xff]
        %v1898 = vld [vmem:[#allocation10 + $0x38] sm:$0xff]
        %v1899 = vld [vmem:[#allocation10 + $0x40] sm:$0xff]
        %v1900 = vld [vmem:[#allocation10 + $0x48] sm:$0xff]
        %v1901 = vld [vmem:[#allocation10 + $0x50] sm:$0xff]
        %v1902 = vld [vmem:[#allocation10 + $0x58] sm:$0xff]
        %v1903 = vld [vmem:[#allocation10 + $0x60] sm:$0xff]
        %v1904 = vld [vmem:[#allocation10 + $0x68] sm:$0xff]
        %v1905 = vld [vmem:[#allocation10 + $0x70] sm:$0xff]
        %v1906 = vld [vmem:[#allocation10 + $0x78] sm:$0xff]
        %v1907 = vld [vmem:[#allocation10 + $0x80] sm:$0xff]
        %v1908 = vld [vmem:[#allocation10 + $0x88] sm:$0xff]
        %v1909 = vld [vmem:[#allocation10 + $0x90] sm:$0xff]
        %v1910 = vld [vmem:[#allocation10 + $0x98] sm:$0xff]
        %v1911 = vld [vmem:[#allocation10 + $0xa0] sm:$0xff]
        %v1912 = vld [vmem:[#allocation10 + $0xa8] sm:$0xff]
        %v1913 = vld [vmem:[#allocation10 + $0xb0] sm:$0xff]
        %v1914 = vld [vmem:[#allocation10 + $0xb8] sm:$0xff]
        %v1915 = vld [vmem:[#allocation10 + $0xc0] sm:$0xff]
        %v1916 = vld [vmem:[#allocation10 + $0xc8] sm:$0xff]
        %v1917 = vld [vmem:[#allocation10 + $0xd0] sm:$0xff]
        %v1918 = vld [vmem:[#allocation10 + $0xd8] sm:$0xff]
        %v1919 = vld [vmem:[#allocation10 + $0xe0] sm:$0xff]
        %v1920 = vld [vmem:[#allocation10 + $0xe8] sm:$0xff]
        %v1921 = vld [vmem:[#allocation10 + $0xf0] sm:$0xff]
        %v1922 = vld [vmem:[#allocation10 + $0xf8] sm:$0xff]
        %1924 = vset.pattern.permute.xlu0 0
        %1925 = vperm.xlu0 %1924, %v1891
        %v1926 = vpop.permute.xlu0 %1925
        %1929 = vset.pattern.permute.xlu0 0
        %1930 = vperm.xlu0 %1929, %v1892
        %v1931 = vpop.permute.xlu0 %1930
        %1934 = vset.pattern.permute.xlu0 0
        %1935 = vperm.xlu0 %1934, %v1893
        %v1936 = vpop.permute.xlu0 %1935
        %1939 = vset.pattern.permute.xlu0 0
        %1940 = vperm.xlu0 %1939, %v1894
        %v1941 = vpop.permute.xlu0 %1940
        %1944 = vset.pattern.permute.xlu0 0
        %1945 = vperm.xlu0 %1944, %v1895
        %v1946 = vpop.permute.xlu0 %1945
        %1949 = vset.pattern.permute.xlu0 0
        %1950 = vperm.xlu0 %1949, %v1896
        %v1951 = vpop.permute.xlu0 %1950
        %1954 = vset.pattern.permute.xlu0 0
        %1955 = vperm.xlu0 %1954, %v1897
        %v1956 = vpop.permute.xlu0 %1955
        %1959 = vset.pattern.permute.xlu0 0
        %1960 = vperm.xlu0 %1959, %v1898
        %v1961 = vpop.permute.xlu0 %1960
        %1964 = vset.pattern.permute.xlu0 0
        %1965 = vperm.xlu0 %1964, %v1899
        %v1966 = vpop.permute.xlu0 %1965
        %1969 = vset.pattern.permute.xlu0 0
        %1970 = vperm.xlu0 %1969, %v1900
        %v1971 = vpop.permute.xlu0 %1970
        %1974 = vset.pattern.permute.xlu0 0
        %1975 = vperm.xlu0 %1974, %v1901
        %v1976 = vpop.permute.xlu0 %1975
        %1979 = vset.pattern.permute.xlu0 0
        %1980 = vperm.xlu0 %1979, %v1902
        %v1981 = vpop.permute.xlu0 %1980
        %1984 = vset.pattern.permute.xlu0 0
        %1985 = vperm.xlu0 %1984, %v1903
        %v1986 = vpop.permute.xlu0 %1985
        %1989 = vset.pattern.permute.xlu0 0
        %1990 = vperm.xlu0 %1989, %v1904
        %v1991 = vpop.permute.xlu0 %1990
        %1994 = vset.pattern.permute.xlu0 0
        %1995 = vperm.xlu0 %1994, %v1905
        %v1996 = vpop.permute.xlu0 %1995
        %1999 = vset.pattern.permute.xlu0 0
        %2000 = vperm.xlu0 %1999, %v1906
        %v2001 = vpop.permute.xlu0 %2000
        %2004 = vset.pattern.permute.xlu0 0
        %2005 = vperm.xlu0 %2004, %v1907
        %v2006 = vpop.permute.xlu0 %2005
        %2009 = vset.pattern.permute.xlu0 0
        %2010 = vperm.xlu0 %2009, %v1908
        %v2011 = vpop.permute.xlu0 %2010
        %2014 = vset.pattern.permute.xlu0 0
        %2015 = vperm.xlu0 %2014, %v1909
        %v2016 = vpop.permute.xlu0 %2015
        %2019 = vset.pattern.permute.xlu0 0
        %2020 = vperm.xlu0 %2019, %v1910
        %v2021 = vpop.permute.xlu0 %2020
        %2024 = vset.pattern.permute.xlu0 0
        %2025 = vperm.xlu0 %2024, %v1911
        %v2026 = vpop.permute.xlu0 %2025
        %2029 = vset.pattern.permute.xlu0 0
        %2030 = vperm.xlu0 %2029, %v1912
        %v2031 = vpop.permute.xlu0 %2030
        %2034 = vset.pattern.permute.xlu0 0
        %2035 = vperm.xlu0 %2034, %v1913
        %v2036 = vpop.permute.xlu0 %2035
        %2039 = vset.pattern.permute.xlu0 0
        %2040 = vperm.xlu0 %2039, %v1914
        %v2041 = vpop.permute.xlu0 %2040
        %2044 = vset.pattern.permute.xlu0 0
        %2045 = vperm.xlu0 %2044, %v1915
        %v2046 = vpop.permute.xlu0 %2045
        %2049 = vset.pattern.permute.xlu0 0
        %2050 = vperm.xlu0 %2049, %v1916
        %v2051 = vpop.permute.xlu0 %2050
        %2054 = vset.pattern.permute.xlu0 0
        %2055 = vperm.xlu0 %2054, %v1917
        %v2056 = vpop.permute.xlu0 %2055
        %2059 = vset.pattern.permute.xlu0 0
        %2060 = vperm.xlu0 %2059, %v1918
        %v2061 = vpop.permute.xlu0 %2060
        %2064 = vset.pattern.permute.xlu0 0
        %2065 = vperm.xlu0 %2064, %v1919
        %v2066 = vpop.permute.xlu0 %2065
        %2069 = vset.pattern.permute.xlu0 0
        %2070 = vperm.xlu0 %2069, %v1920
        %v2071 = vpop.permute.xlu0 %2070
        %2074 = vset.pattern.permute.xlu0 0
        %2075 = vperm.xlu0 %2074, %v1921
        %v2076 = vpop.permute.xlu0 %2075
        %2079 = vset.pattern.permute.xlu0 0
        %2080 = vperm.xlu0 %2079, %v1922
        %v2081 = vpop.permute.xlu0 %2080
        %v2083 = vmul.f32 %v1926, %v1733
        %v2084 = vmul.f32 %v1931, %v1737
        %v2085 = vmul.f32 %v1936, %v1743
        %v2086 = vmul.f32 %v1941, %v1747
        %v2087 = vmul.f32 %v1946, %v1753
        %v2088 = vmul.f32 %v1951, %v1757
        %v2089 = vmul.f32 %v1956, %v1763
        %v2090 = vmul.f32 %v1961, %v1767
        %v2091 = vmul.f32 %v1966, %v1773
        %v2092 = vmul.f32 %v1971, %v1777
        %v2093 = vmul.f32 %v1976, %v1783
        %v2094 = vmul.f32 %v1981, %v1787
        %v2095 = vmul.f32 %v1986, %v1793
        %v2096 = vmul.f32 %v1991, %v1797
        %v2097 = vmul.f32 %v1996, %v1803
        %v2098 = vmul.f32 %v2001, %v1807
        %v2099 = vmul.f32 %v2006, %v1813
        %v2100 = vmul.f32 %v2011, %v1817
        %v2101 = vmul.f32 %v2016, %v1823
        %v2102 = vmul.f32 %v2021, %v1827
        %v2103 = vmul.f32 %v2026, %v1833
        %v2104 = vmul.f32 %v2031, %v1837
        %v2105 = vmul.f32 %v2036, %v1843
        %v2106 = vmul.f32 %v2041, %v1847
        %v2107 = vmul.f32 %v2046, %v1853
        %v2108 = vmul.f32 %v2051, %v1857
        %v2109 = vmul.f32 %v2056, %v1863
        %v2110 = vmul.f32 %v2061, %v1867
        %v2111 = vmul.f32 %v2066, %v1873
        %v2112 = vmul.f32 %v2071, %v1877
        %v2113 = vmul.f32 %v2076, %v1883
        %v2114 = vmul.f32 %v2081, %v1887
        %v2115 = vld [vmem:[#allocation11] sm:$0xff]
        %v2116 = vld [vmem:[#allocation11 + $0x8] sm:$0xff]
        %v2117 = vld [vmem:[#allocation11 + $0x10] sm:$0xff]
        %v2118 = vld [vmem:[#allocation11 + $0x18] sm:$0xff]
        %v2119 = vld [vmem:[#allocation11 + $0x20] sm:$0xff]
        %v2120 = vld [vmem:[#allocation11 + $0x28] sm:$0xff]
        %v2121 = vld [vmem:[#allocation11 + $0x30] sm:$0xff]
        %v2122 = vld [vmem:[#allocation11 + $0x38] sm:$0xff]
        %v2123 = vld [vmem:[#allocation11 + $0x40] sm:$0xff]
        %v2124 = vld [vmem:[#allocation11 + $0x48] sm:$0xff]
        %v2125 = vld [vmem:[#allocation11 + $0x50] sm:$0xff]
        %v2126 = vld [vmem:[#allocation11 + $0x58] sm:$0xff]
        %v2127 = vld [vmem:[#allocation11 + $0x60] sm:$0xff]
        %v2128 = vld [vmem:[#allocation11 + $0x68] sm:$0xff]
        %v2129 = vld [vmem:[#allocation11 + $0x70] sm:$0xff]
        %v2130 = vld [vmem:[#allocation11 + $0x78] sm:$0xff]
        %v2131 = vld [vmem:[#allocation11 + $0x80] sm:$0xff]
        %v2132 = vld [vmem:[#allocation11 + $0x88] sm:$0xff]
        %v2133 = vld [vmem:[#allocation11 + $0x90] sm:$0xff]
        %v2134 = vld [vmem:[#allocation11 + $0x98] sm:$0xff]
        %v2135 = vld [vmem:[#allocation11 + $0xa0] sm:$0xff]
        %v2136 = vld [vmem:[#allocation11 + $0xa8] sm:$0xff]
        %v2137 = vld [vmem:[#allocation11 + $0xb0] sm:$0xff]
        %v2138 = vld [vmem:[#allocation11 + $0xb8] sm:$0xff]
        %v2139 = vld [vmem:[#allocation11 + $0xc0] sm:$0xff]
        %v2140 = vld [vmem:[#allocation11 + $0xc8] sm:$0xff]
        %v2141 = vld [vmem:[#allocation11 + $0xd0] sm:$0xff]
        %v2142 = vld [vmem:[#allocation11 + $0xd8] sm:$0xff]
        %v2143 = vld [vmem:[#allocation11 + $0xe0] sm:$0xff]
        %v2144 = vld [vmem:[#allocation11 + $0xe8] sm:$0xff]
        %v2145 = vld [vmem:[#allocation11 + $0xf0] sm:$0xff]
        %v2146 = vld [vmem:[#allocation11 + $0xf8] sm:$0xff]
        %v2147 = vpack.c.bf16 %v1739, %v1735
        %v2148 = vpack.c.bf16 %v1749, %v1745
        %v2149 = vpack.c.bf16 %v1759, %v1755
        %v2150 = vpack.c.bf16 %v1769, %v1765
        %v2151 = vpack.c.bf16 %v1779, %v1775
        %v2152 = vpack.c.bf16 %v1789, %v1785
        %v2153 = vpack.c.bf16 %v1799, %v1795
        %v2154 = vpack.c.bf16 %v1809, %v1805
        %v2155 = vpack.c.bf16 %v1819, %v1815
        %v2156 = vpack.c.bf16 %v1829, %v1825
        %v2157 = vpack.c.bf16 %v1839, %v1835
        %v2158 = vpack.c.bf16 %v1849, %v1845
        %v2159 = vpack.c.bf16 %v1859, %v1855
        %v2160 = vpack.c.bf16 %v1869, %v1865
        %v2161 = vpack.c.bf16 %v1879, %v1875
        %v2162 = vpack.c.bf16 %v1889, %v1885
        %v2195 = vunpack.c.l.b16 %v2115
        %v2196 = vunpack.c.h.b16 %v2115
        %v2197 = vunpack.c.l.b16 %v2116
        %v2198 = vunpack.c.h.b16 %v2116
        %v2199 = vunpack.c.l.b16 %v2117
        %v2200 = vunpack.c.h.b16 %v2117
        %v2201 = vunpack.c.l.b16 %v2118
        %v2202 = vunpack.c.h.b16 %v2118
        %v2203 = vunpack.c.l.b16 %v2119
        %v2204 = vunpack.c.h.b16 %v2119
        %v2205 = vunpack.c.l.b16 %v2120
        %v2206 = vunpack.c.h.b16 %v2120
        %v2207 = vunpack.c.l.b16 %v2121
        %v2208 = vunpack.c.h.b16 %v2121
        %v2209 = vunpack.c.l.b16 %v2122
        %v2210 = vunpack.c.h.b16 %v2122
        %v2211 = vunpack.c.l.b16 %v2123
        %v2212 = vunpack.c.h.b16 %v2123
        %v2213 = vunpack.c.l.b16 %v2124
        %v2214 = vunpack.c.h.b16 %v2124
        %v2215 = vunpack.c.l.b16 %v2125
        %v2216 = vunpack.c.h.b16 %v2125
        %v2217 = vunpack.c.l.b16 %v2126
        %v2218 = vunpack.c.h.b16 %v2126
        %v2219 = vunpack.c.l.b16 %v2127
        %v2220 = vunpack.c.h.b16 %v2127
        %v2221 = vunpack.c.l.b16 %v2128
        %v2222 = vunpack.c.h.b16 %v2128
        %v2223 = vunpack.c.l.b16 %v2129
        %v2224 = vunpack.c.h.b16 %v2129
        %v2225 = vunpack.c.l.b16 %v2130
        %v2226 = vunpack.c.h.b16 %v2130
        %v2227 = vunpack.c.l.b16 %v2131
        %v2228 = vunpack.c.h.b16 %v2131
        %v2229 = vunpack.c.l.b16 %v2132
        %v2230 = vunpack.c.h.b16 %v2132
        %v2231 = vunpack.c.l.b16 %v2133
        %v2232 = vunpack.c.h.b16 %v2133
        %v2233 = vunpack.c.l.b16 %v2134
        %v2234 = vunpack.c.h.b16 %v2134
        %v2235 = vunpack.c.l.b16 %v2135
        %v2236 = vunpack.c.h.b16 %v2135
        %v2237 = vunpack.c.l.b16 %v2136
        %v2238 = vunpack.c.h.b16 %v2136
        %v2239 = vunpack.c.l.b16 %v2137
        %v2240 = vunpack.c.h.b16 %v2137
        %v2241 = vunpack.c.l.b16 %v2138
        %v2242 = vunpack.c.h.b16 %v2138
        %v2243 = vunpack.c.l.b16 %v2139
        %v2244 = vunpack.c.h.b16 %v2139
        %v2245 = vunpack.c.l.b16 %v2140
        %v2246 = vunpack.c.h.b16 %v2140
        %v2247 = vunpack.c.l.b16 %v2141
        %v2248 = vunpack.c.h.b16 %v2141
        %v2249 = vunpack.c.l.b16 %v2142
        %v2250 = vunpack.c.h.b16 %v2142
        %v2251 = vunpack.c.l.b16 %v2143
        %v2252 = vunpack.c.h.b16 %v2143
        %v2253 = vunpack.c.l.b16 %v2144
        %v2254 = vunpack.c.h.b16 %v2144
        %v2255 = vunpack.c.l.b16 %v2145
        %v2256 = vunpack.c.h.b16 %v2145
        %v2257 = vunpack.c.l.b16 %v2146
        %v2258 = vunpack.c.h.b16 %v2146
        %v2259 = vpack.c.b16 %v2197, %v2195
        %v2260 = vpack.c.b16 %v2198, %v2196
        %v2261 = vpack.c.b16 %v2201, %v2199
        %v2262 = vpack.c.b16 %v2202, %v2200
        %v2263 = vpack.c.b16 %v2205, %v2203
        %v2264 = vpack.c.b16 %v2206, %v2204
        %v2265 = vpack.c.b16 %v2209, %v2207
        %v2266 = vpack.c.b16 %v2210, %v2208
        %v2267 = vpack.c.b16 %v2213, %v2211
        %v2268 = vpack.c.b16 %v2214, %v2212
        %v2269 = vpack.c.b16 %v2217, %v2215
        %v2270 = vpack.c.b16 %v2218, %v2216
        %v2271 = vpack.c.b16 %v2221, %v2219
        %v2272 = vpack.c.b16 %v2222, %v2220
        %v2273 = vpack.c.b16 %v2225, %v2223
        %v2274 = vpack.c.b16 %v2226, %v2224
        %v2275 = vpack.c.b16 %v2229, %v2227
        %v2276 = vpack.c.b16 %v2230, %v2228
        %v2277 = vpack.c.b16 %v2233, %v2231
        %v2278 = vpack.c.b16 %v2234, %v2232
        %v2279 = vpack.c.b16 %v2237, %v2235
        %v2280 = vpack.c.b16 %v2238, %v2236
        %v2281 = vpack.c.b16 %v2241, %v2239
        %v2282 = vpack.c.b16 %v2242, %v2240
        %v2283 = vpack.c.b16 %v2245, %v2243
        %v2284 = vpack.c.b16 %v2246, %v2244
        %v2285 = vpack.c.b16 %v2249, %v2247
        %v2286 = vpack.c.b16 %v2250, %v2248
        %v2287 = vpack.c.b16 %v2253, %v2251
        %v2288 = vpack.c.b16 %v2254, %v2252
        %v2289 = vpack.c.b16 %v2257, %v2255
        %v2290 = vpack.c.b16 %v2258, %v2256
        %2323 = vmatprep.subr.bf16.mxu0 0
        %2324 = vmatpush1.bf16.msra.mxu0 %v2154
        %2325 = vmatprep.subr.bf16.mxu0 0
        %2326 = vmatpush1.bf16.msra.mxu0 %v2153
        %2327 = vmatprep.subr.bf16.mxu0 0
        %2328 = vmatpush1.bf16.msra.mxu0 %v2152
        %2329 = vmatprep.subr.bf16.mxu0 0
        %2330 = vmatpush1.bf16.msra.mxu0 %v2151
        %2331 = vmatprep.subr.bf16.mxu0 0
        %2332 = vmatpush1.bf16.msra.mxu0 %v2150
        %2333 = vmatprep.subr.bf16.mxu0 0
        %2334 = vmatpush1.bf16.msra.mxu0 %v2149
        %2335 = vmatprep.subr.bf16.mxu0 0
        %2336 = vmatpush1.bf16.msra.mxu0 %v2148
        %2337 = vmatprep.subr.bf16.mxu0 0
        %2338 = vmatpush1.bf16.msra.mxu0 %v2147
        %2339 = vmatprep.subr.bf16.mxu0 0
        %2340 = vmatpush2.bf16.msra.mxu0 %v2162
        %2341 = vmatprep.subr.bf16.mxu0 0
        %2342 = vmatpush2.bf16.msra.mxu0 %v2161
        %2343 = vmatprep.subr.bf16.mxu0 0
        %2344 = vmatpush2.bf16.msra.mxu0 %v2160
        %2345 = vmatprep.subr.bf16.mxu0 0
        %2346 = vmatpush2.bf16.msra.mxu0 %v2159
        %2347 = vmatprep.subr.bf16.mxu0 0
        %2348 = vmatpush2.bf16.msra.mxu0 %v2158
        %2349 = vmatprep.subr.bf16.mxu0 0
        %2350 = vmatpush2.bf16.msra.mxu0 %v2157
        %2351 = vmatprep.subr.bf16.mxu0 0
        %2352 = vmatpush2.bf16.msra.mxu0 %v2156
        %2353 = vmatprep.subr.bf16.mxu0 0
        %2354 = vmatpush2.bf16.msra.mxu0 %v2155
        %2355 = vmatprep.mubr.bf16.mxu0 %v2260
        %2356 = vmatmul.mubr.bf16.gmra.mxu0 %v2259
        %v2357 = vpop.f32.mrf.mxu0
        %v2358 = vadd.f32 0.0, %v2357
        %v2359 = vpop.f32.mrf.mxu0
        %v2360 = vpop.f32.mrf.mxu0
        %v2361 = vadd.f32 0.0, %v2360
        %v2362 = vpop.f32.mrf.mxu0
        %2363 = vmatprep.mubr.bf16.mxu0 %v2262
        %2364 = vmatmul.mubr.bf16.gmra.mxu0 %v2261
        %v2365 = vpop.f32.mrf.mxu0
        %v2366 = vadd.f32 0.0, %v2365
        %v2367 = vpop.f32.mrf.mxu0
        %v2368 = vpop.f32.mrf.mxu0
        %v2369 = vadd.f32 0.0, %v2368
        %v2370 = vpop.f32.mrf.mxu0
        %2371 = vmatprep.mubr.bf16.mxu0 %v2264
        %2372 = vmatmul.mubr.bf16.gmra.mxu0 %v2263
        %v2373 = vpop.f32.mrf.mxu0
        %v2374 = vadd.f32 0.0, %v2373
        %v2375 = vpop.f32.mrf.mxu0
        %v2376 = vpop.f32.mrf.mxu0
        %v2377 = vadd.f32 0.0, %v2376
        %v2378 = vpop.f32.mrf.mxu0
        %2379 = vmatprep.mubr.bf16.mxu0 %v2266
        %2380 = vmatmul.mubr.bf16.gmra.mxu0 %v2265
        %v2381 = vpop.f32.mrf.mxu0
        %v2382 = vadd.f32 0.0, %v2381
        %v2383 = vpop.f32.mrf.mxu0
        %v2384 = vpop.f32.mrf.mxu0
        %v2385 = vadd.f32 0.0, %v2384
        %v2386 = vpop.f32.mrf.mxu0
        %2387 = vmatprep.mubr.bf16.mxu0 %v2268
        %2388 = vmatmul.mubr.bf16.gmra.mxu0 %v2267
        %v2389 = vpop.f32.mrf.mxu0
        %v2390 = vadd.f32 0.0, %v2389
        %v2391 = vpop.f32.mrf.mxu0
        %v2392 = vpop.f32.mrf.mxu0
        %v2393 = vadd.f32 0.0, %v2392
        %v2394 = vpop.f32.mrf.mxu0
        %2395 = vmatprep.mubr.bf16.mxu0 %v2270
        %2396 = vmatmul.mubr.bf16.gmra.mxu0 %v2269
        %v2397 = vpop.f32.mrf.mxu0
        %v2398 = vadd.f32 0.0, %v2397
        %v2399 = vpop.f32.mrf.mxu0
        %v2400 = vpop.f32.mrf.mxu0
        %v2401 = vadd.f32 0.0, %v2400
        %v2402 = vpop.f32.mrf.mxu0
        %2403 = vmatprep.mubr.bf16.mxu0 %v2272
        %2404 = vmatmul.mubr.bf16.gmra.mxu0 %v2271
        %v2405 = vpop.f32.mrf.mxu0
        %v2406 = vadd.f32 0.0, %v2405
        %v2407 = vpop.f32.mrf.mxu0
        %v2408 = vpop.f32.mrf.mxu0
        %v2409 = vadd.f32 0.0, %v2408
        %v2410 = vpop.f32.mrf.mxu0
        %2411 = vmatprep.mubr.bf16.mxu0 %v2274
        %2412 = vmatmul.mubr.bf16.gmra.mxu0 %v2273
        %v2413 = vpop.f32.mrf.mxu0
        %v2414 = vadd.f32 0.0, %v2413
        %v2415 = vpop.f32.mrf.mxu0
        %v2416 = vpop.f32.mrf.mxu0
        %v2417 = vadd.f32 0.0, %v2416
        %v2418 = vpop.f32.mrf.mxu0
        %2419 = vmatprep.mubr.bf16.mxu0 %v2276
        %2420 = vmatmul.mubr.bf16.gmra.mxu0 %v2275
        %v2421 = vpop.f32.mrf.mxu0
        %v2422 = vadd.f32 0.0, %v2421
        %v2423 = vpop.f32.mrf.mxu0
        %v2424 = vpop.f32.mrf.mxu0
        %v2425 = vadd.f32 0.0, %v2424
        %v2426 = vpop.f32.mrf.mxu0
        %2427 = vmatprep.mubr.bf16.mxu0 %v2278
        %2428 = vmatmul.mubr.bf16.gmra.mxu0 %v2277
        %v2429 = vpop.f32.mrf.mxu0
        %v2430 = vadd.f32 0.0, %v2429
        %v2431 = vpop.f32.mrf.mxu0
        %v2432 = vpop.f32.mrf.mxu0
        %v2433 = vadd.f32 0.0, %v2432
        %v2434 = vpop.f32.mrf.mxu0
        %2435 = vmatprep.mubr.bf16.mxu0 %v2280
        %2436 = vmatmul.mubr.bf16.gmra.mxu0 %v2279
        %v2437 = vpop.f32.mrf.mxu0
        %v2438 = vadd.f32 0.0, %v2437
        %v2439 = vpop.f32.mrf.mxu0
        %v2440 = vpop.f32.mrf.mxu0
        %v2441 = vadd.f32 0.0, %v2440
        %v2442 = vpop.f32.mrf.mxu0
        %2443 = vmatprep.mubr.bf16.mxu0 %v2282
        %2444 = vmatmul.mubr.bf16.gmra.mxu0 %v2281
        %v2445 = vpop.f32.mrf.mxu0
        %v2446 = vadd.f32 0.0, %v2445
        %v2447 = vpop.f32.mrf.mxu0
        %v2448 = vpop.f32.mrf.mxu0
        %v2449 = vadd.f32 0.0, %v2448
        %v2450 = vpop.f32.mrf.mxu0
        %2451 = vmatprep.mubr.bf16.mxu0 %v2284
        %2452 = vmatmul.mubr.bf16.gmra.mxu0 %v2283
        %v2453 = vpop.f32.mrf.mxu0
        %v2454 = vadd.f32 0.0, %v2453
        %v2455 = vpop.f32.mrf.mxu0
        %v2456 = vpop.f32.mrf.mxu0
        %v2457 = vadd.f32 0.0, %v2456
        %v2458 = vpop.f32.mrf.mxu0
        %2459 = vmatprep.mubr.bf16.mxu0 %v2286
        %2460 = vmatmul.mubr.bf16.gmra.mxu0 %v2285
        %v2461 = vpop.f32.mrf.mxu0
        %v2462 = vadd.f32 0.0, %v2461
        %v2463 = vpop.f32.mrf.mxu0
        %v2464 = vpop.f32.mrf.mxu0
        %v2465 = vadd.f32 0.0, %v2464
        %v2466 = vpop.f32.mrf.mxu0
        %2467 = vmatprep.mubr.bf16.mxu0 %v2288
        %2468 = vmatmul.mubr.bf16.gmra.mxu0 %v2287
        %v2469 = vpop.f32.mrf.mxu0
        %v2470 = vadd.f32 0.0, %v2469
        %v2471 = vpop.f32.mrf.mxu0
        %v2472 = vpop.f32.mrf.mxu0
        %v2473 = vadd.f32 0.0, %v2472
        %v2474 = vpop.f32.mrf.mxu0
        %2475 = vmatprep.mubr.bf16.mxu0 %v2290
        %2476 = vmatmul.mubr.bf16.gmra.mxu0 %v2289
        %v2477 = vpop.f32.mrf.mxu0
        %v2478 = vadd.f32 0.0, %v2477
        %v2479 = vpop.f32.mrf.mxu0
        %v2480 = vpop.f32.mrf.mxu0
        %v2481 = vadd.f32 0.0, %v2480
        %v2482 = vpop.f32.mrf.mxu0
        %2483 = vdwg.mxu0
        %v2484 = vadd.f32 %v2083, %v2358
        %v2485 = vadd.f32 %v2084, %v2361
        %v2486 = vadd.f32 %v2085, %v2366
        %v2487 = vadd.f32 %v2086, %v2369
        %v2488 = vadd.f32 %v2087, %v2374
        %v2489 = vadd.f32 %v2088, %v2377
        %v2490 = vadd.f32 %v2089, %v2382
        %v2491 = vadd.f32 %v2090, %v2385
        %v2492 = vadd.f32 %v2091, %v2390
        %v2493 = vadd.f32 %v2092, %v2393
        %v2494 = vadd.f32 %v2093, %v2398
        %v2495 = vadd.f32 %v2094, %v2401
        %v2496 = vadd.f32 %v2095, %v2406
        %v2497 = vadd.f32 %v2096, %v2409
        %v2498 = vadd.f32 %v2097, %v2414
        %v2499 = vadd.f32 %v2098, %v2417
        %v2500 = vadd.f32 %v2099, %v2422
        %v2501 = vadd.f32 %v2100, %v2425
        %v2502 = vadd.f32 %v2101, %v2430
        %v2503 = vadd.f32 %v2102, %v2433
        %v2504 = vadd.f32 %v2103, %v2438
        %v2505 = vadd.f32 %v2104, %v2441
        %v2506 = vadd.f32 %v2105, %v2446
        %v2507 = vadd.f32 %v2106, %v2449
        %v2508 = vadd.f32 %v2107, %v2454
        %v2509 = vadd.f32 %v2108, %v2457
        %v2510 = vadd.f32 %v2109, %v2462
        %v2511 = vadd.f32 %v2110, %v2465
        %v2512 = vadd.f32 %v2111, %v2470
        %v2513 = vadd.f32 %v2112, %v2473
        %v2514 = vadd.f32 %v2113, %v2478
        %v2515 = vadd.f32 %v2114, %v2481
        %v2516 = vld [vmem:[%s8] sm:$0x1]
        %v2518 = vlaneseq
        %v2519 = vshrl.u32 %v2518, 7
        %v2520 = vsub.s32 0, %v2519
        %v2521 = vrot.slane %v2516, %v2520
        %v2523 = vadd.f32 %v2484, %v2521
        %v2524 = vadd.f32 %v2485, %v2521
        %v2525 = vadd.f32 %v2486, %v2521
        %v2526 = vadd.f32 %v2487, %v2521
        %v2527 = vadd.f32 %v2488, %v2521
        %v2528 = vadd.f32 %v2489, %v2521
        %v2529 = vadd.f32 %v2490, %v2521
        %v2530 = vadd.f32 %v2491, %v2521
        %v2531 = vadd.f32 %v2492, %v2521
        %v2532 = vadd.f32 %v2493, %v2521
        %v2533 = vadd.f32 %v2494, %v2521
        %v2534 = vadd.f32 %v2495, %v2521
        %v2535 = vadd.f32 %v2496, %v2521
        %v2536 = vadd.f32 %v2497, %v2521
        %v2537 = vadd.f32 %v2498, %v2521
        %v2538 = vadd.f32 %v2499, %v2521
        %v2539 = vadd.f32 %v2500, %v2521
        %v2540 = vadd.f32 %v2501, %v2521
        %v2541 = vadd.f32 %v2502, %v2521
        %v2542 = vadd.f32 %v2503, %v2521
        %v2543 = vadd.f32 %v2504, %v2521
        %v2544 = vadd.f32 %v2505, %v2521
        %v2545 = vadd.f32 %v2506, %v2521
        %v2546 = vadd.f32 %v2507, %v2521
        %v2547 = vadd.f32 %v2508, %v2521
        %v2548 = vadd.f32 %v2509, %v2521
        %v2549 = vadd.f32 %v2510, %v2521
        %v2550 = vadd.f32 %v2511, %v2521
        %v2551 = vadd.f32 %v2512, %v2521
        %v2552 = vadd.f32 %v2513, %v2521
        %v2553 = vadd.f32 %v2514, %v2521
        %v2554 = vadd.f32 %v2515, %v2521
        %v2555 = vmax.f32 %v2523, 0.0
        %v2556 = vmax.f32 %v2524, 0.0
        %v2557 = vmax.f32 %v2525, 0.0
        %v2558 = vmax.f32 %v2526, 0.0
        %v2559 = vmax.f32 %v2527, 0.0
        %v2560 = vmax.f32 %v2528, 0.0
        %v2561 = vmax.f32 %v2529, 0.0
        %v2562 = vmax.f32 %v2530, 0.0
        %v2563 = vmax.f32 %v2531, 0.0
        %v2564 = vmax.f32 %v2532, 0.0
        %v2565 = vmax.f32 %v2533, 0.0
        %v2566 = vmax.f32 %v2534, 0.0
        %v2567 = vmax.f32 %v2535, 0.0
        %v2568 = vmax.f32 %v2536, 0.0
        %v2569 = vmax.f32 %v2537, 0.0
        %v2570 = vmax.f32 %v2538, 0.0
        %v2571 = vmax.f32 %v2539, 0.0
        %v2572 = vmax.f32 %v2540, 0.0
        %v2573 = vmax.f32 %v2541, 0.0
        %v2574 = vmax.f32 %v2542, 0.0
        %v2575 = vmax.f32 %v2543, 0.0
        %v2576 = vmax.f32 %v2544, 0.0
        %v2577 = vmax.f32 %v2545, 0.0
        %v2578 = vmax.f32 %v2546, 0.0
        %v2579 = vmax.f32 %v2547, 0.0
        %v2580 = vmax.f32 %v2548, 0.0
        %v2581 = vmax.f32 %v2549, 0.0
        %v2582 = vmax.f32 %v2550, 0.0
        %v2583 = vmax.f32 %v2551, 0.0
        %v2584 = vmax.f32 %v2552, 0.0
        %v2585 = vmax.f32 %v2553, 0.0
        %v2586 = vmax.f32 %v2554, 0.0
        %v2587 = vadd.f32 %v473, %v2555
        %v2588 = vadd.f32 %v474, %v2556
        %v2589 = vadd.f32 %v475, %v2557
        %v2590 = vadd.f32 %v476, %v2558
        %v2591 = vadd.f32 %v477, %v2559
        %v2592 = vadd.f32 %v478, %v2560
        %v2593 = vadd.f32 %v479, %v2561
        %v2594 = vadd.f32 %v480, %v2562
        %v2595 = vadd.f32 %v481, %v2563
        %v2596 = vadd.f32 %v482, %v2564
        %v2597 = vadd.f32 %v483, %v2565
        %v2598 = vadd.f32 %v484, %v2566
        %v2599 = vadd.f32 %v485, %v2567
        %v2600 = vadd.f32 %v486, %v2568
        %v2601 = vadd.f32 %v487, %v2569
        %v2602 = vadd.f32 %v488, %v2570
        %v2603 = vadd.f32 %v489, %v2571
        %v2604 = vadd.f32 %v490, %v2572
        %v2605 = vadd.f32 %v491, %v2573
        %v2606 = vadd.f32 %v492, %v2574
        %v2607 = vadd.f32 %v493, %v2575
        %v2608 = vadd.f32 %v494, %v2576
        %v2609 = vadd.f32 %v495, %v2577
        %v2610 = vadd.f32 %v496, %v2578
        %v2611 = vadd.f32 %v497, %v2579
        %v2612 = vadd.f32 %v498, %v2580
        %v2613 = vadd.f32 %v499, %v2581
        %v2614 = vadd.f32 %v500, %v2582
        %v2615 = vadd.f32 %v501, %v2583
        %v2616 = vadd.f32 %v502, %v2584
        %v2617 = vadd.f32 %v503, %v2585
        %v2618 = vadd.f32 %v504, %v2586
        %v2619 = vpack.c.bf16 %v2588, %v2587
        %v2620 = vpack.c.bf16 %v2590, %v2589
        %v2621 = vpack.c.bf16 %v2592, %v2591
        %v2622 = vpack.c.bf16 %v2594, %v2593
        %v2623 = vpack.c.bf16 %v2596, %v2595
        %v2624 = vpack.c.bf16 %v2598, %v2597
        %v2625 = vpack.c.bf16 %v2600, %v2599
        %v2626 = vpack.c.bf16 %v2602, %v2601
        %v2627 = vpack.c.bf16 %v2604, %v2603
        %v2628 = vpack.c.bf16 %v2606, %v2605
        %v2629 = vpack.c.bf16 %v2608, %v2607
        %v2630 = vpack.c.bf16 %v2610, %v2609
        %v2631 = vpack.c.bf16 %v2612, %v2611
        %v2632 = vpack.c.bf16 %v2614, %v2613
        %v2633 = vpack.c.bf16 %v2616, %v2615
        %v2634 = vpack.c.bf16 %v2618, %v2617
        %v2651 = vunpack.c.l.b16 %v2619
        %v2652 = vunpack.c.h.b16 %v2619
        %v2653 = vunpack.c.l.b16 %v2620
        %v2654 = vunpack.c.h.b16 %v2620
        %v2655 = vunpack.c.l.b16 %v2621
        %v2656 = vunpack.c.h.b16 %v2621
        %v2657 = vunpack.c.l.b16 %v2622
        %v2658 = vunpack.c.h.b16 %v2622
        %v2659 = vunpack.c.l.b16 %v2623
        %v2660 = vunpack.c.h.b16 %v2623
        %v2661 = vunpack.c.l.b16 %v2624
        %v2662 = vunpack.c.h.b16 %v2624
        %v2663 = vunpack.c.l.b16 %v2625
        %v2664 = vunpack.c.h.b16 %v2625
        %v2665 = vunpack.c.l.b16 %v2626
        %v2666 = vunpack.c.h.b16 %v2626
        %v2667 = vunpack.c.l.b16 %v2627
        %v2668 = vunpack.c.h.b16 %v2627
        %v2669 = vunpack.c.l.b16 %v2628
        %v2670 = vunpack.c.h.b16 %v2628
        %v2671 = vunpack.c.l.b16 %v2629
        %v2672 = vunpack.c.h.b16 %v2629
        %v2673 = vunpack.c.l.b16 %v2630
        %v2674 = vunpack.c.h.b16 %v2630
        %v2675 = vunpack.c.l.b16 %v2631
        %v2676 = vunpack.c.h.b16 %v2631
        %v2677 = vunpack.c.l.b16 %v2632
        %v2678 = vunpack.c.h.b16 %v2632
        %v2679 = vunpack.c.l.b16 %v2633
        %v2680 = vunpack.c.h.b16 %v2633
        %v2681 = vunpack.c.l.b16 %v2634
        %v2682 = vunpack.c.h.b16 %v2634
        %v2683 = vpack.c.b16 %v2651, %v2651
        %v2684 = vpack.c.b16 %v2652, %v2652
        %v2685 = vpack.c.b16 %v2653, %v2653
        %v2686 = vpack.c.b16 %v2654, %v2654
        %v2687 = vpack.c.b16 %v2655, %v2655
        %v2688 = vpack.c.b16 %v2656, %v2656
        %v2689 = vpack.c.b16 %v2657, %v2657
        %v2690 = vpack.c.b16 %v2658, %v2658
        %v2691 = vpack.c.b16 %v2659, %v2659
        %v2692 = vpack.c.b16 %v2660, %v2660
        %v2693 = vpack.c.b16 %v2661, %v2661
        %v2694 = vpack.c.b16 %v2662, %v2662
        %v2695 = vpack.c.b16 %v2663, %v2663
        %v2696 = vpack.c.b16 %v2664, %v2664
        %v2697 = vpack.c.b16 %v2665, %v2665
        %v2698 = vpack.c.b16 %v2666, %v2666
        %v2699 = vpack.c.b16 %v2667, %v2667
        %v2700 = vpack.c.b16 %v2668, %v2668
        %v2701 = vpack.c.b16 %v2669, %v2669
        %v2702 = vpack.c.b16 %v2670, %v2670
        %v2703 = vpack.c.b16 %v2671, %v2671
        %v2704 = vpack.c.b16 %v2672, %v2672
        %v2705 = vpack.c.b16 %v2673, %v2673
        %v2706 = vpack.c.b16 %v2674, %v2674
        %v2707 = vpack.c.b16 %v2675, %v2675
        %v2708 = vpack.c.b16 %v2676, %v2676
        %v2709 = vpack.c.b16 %v2677, %v2677
        %v2710 = vpack.c.b16 %v2678, %v2678
        %v2711 = vpack.c.b16 %v2679, %v2679
        %v2712 = vpack.c.b16 %v2680, %v2680
        %v2713 = vpack.c.b16 %v2681, %v2681
        %v2714 = vpack.c.b16 %v2682, %v2682
        %2747 = vst [vmem:[%s437] sm:$0xf] %v2683
        %2748 = vst [vmem:[%s437 + $0x4] sm:$0xf] %v2684
        %2749 = vst [vmem:[%s437 + $0x8] sm:$0xf] %v2685
        %2750 = vst [vmem:[%s437 + $0xc] sm:$0xf] %v2686
        %2751 = vst [vmem:[%s437 + $0x10] sm:$0xf] %v2687
        %2752 = vst [vmem:[%s437 + $0x14] sm:$0xf] %v2688
        %2753 = vst [vmem:[%s437 + $0x18] sm:$0xf] %v2689
        %2754 = vst [vmem:[%s437 + $0x1c] sm:$0xf] %v2690
        %2755 = vst [vmem:[%s437 + $0x20] sm:$0xf] %v2691
        %2756 = vst [vmem:[%s437 + $0x24] sm:$0xf] %v2692
        %2757 = vst [vmem:[%s437 + $0x28] sm:$0xf] %v2693
        %2758 = vst [vmem:[%s437 + $0x2c] sm:$0xf] %v2694
        %2759 = vst [vmem:[%s437 + $0x30] sm:$0xf] %v2695
        %2760 = vst [vmem:[%s437 + $0x34] sm:$0xf] %v2696
        %2761 = vst [vmem:[%s437 + $0x38] sm:$0xf] %v2697
        %2762 = vst [vmem:[%s437 + $0x3c] sm:$0xf] %v2698
        %2763 = vst [vmem:[%s437 + $0x40] sm:$0xf] %v2699
        %2764 = vst [vmem:[%s437 + $0x44] sm:$0xf] %v2700
        %2765 = vst [vmem:[%s437 + $0x48] sm:$0xf] %v2701
        %2766 = vst [vmem:[%s437 + $0x4c] sm:$0xf] %v2702
        %2767 = vst [vmem:[%s437 + $0x50] sm:$0xf] %v2703
        %2768 = vst [vmem:[%s437 + $0x54] sm:$0xf] %v2704
        %2769 = vst [vmem:[%s437 + $0x58] sm:$0xf] %v2705
        %2770 = vst [vmem:[%s437 + $0x5c] sm:$0xf] %v2706
        %2771 = vst [vmem:[%s437 + $0x60] sm:$0xf] %v2707
        %2772 = vst [vmem:[%s437 + $0x64] sm:$0xf] %v2708
        %2773 = vst [vmem:[%s437 + $0x68] sm:$0xf] %v2709
        %2774 = vst [vmem:[%s437 + $0x6c] sm:$0xf] %v2710
        %2775 = vst [vmem:[%s437 + $0x70] sm:$0xf] %v2711
        %2776 = vst [vmem:[%s437 + $0x74] sm:$0xf] %v2712
        %2777 = vst [vmem:[%s437 + $0x78] sm:$0xf] %v2713
        %2778 = vst [vmem:[%s437 + $0x7c] sm:$0xf] %v2714
        %s2779 = sand.u32 %s231, 1
        %s2780 = scalar_lea.sflag [#allocation4], %s2779
        %s2781 = sand.u32 %s231, 1
        %s2782 = smul.addr %s2781, 128
        %s2783 = scalar_lea.vmem [#allocation14], %s2782
        // Predicated region
        $region85: #{_lambda_.1} parent=55 // pred_check
          %p2784 = pneg %p241
        $region86: #{_lambda_.1} parent=55 // pred_check_branch
          %2786 = sbr.rel (%p2784) target = $region88
        $region87: #{_lambda_.1} parent=55 // pred_region
          %s2787 = smul.u32 32, %s29
          %s2789 = ssub.s32 2048, 2048
          %2790 = vsyncadd %s2780, %s2789
          %s2791 = smul.addr %s2787, 64
          %s2792 = scalar_lea.hbm %s9, %s2791
          %s2793 = sshll.u32 %s2783, 4
          %s2794 = int_to_ptr.vmem [resolvable:$true] %s2793
          %2799 = dma.vmem_to_hbm [thread:$0]  %s2794, 2048, %s2792, %s2780, 64, 64, 4
        $region88: #{_lambda_.1} parent=55 // pred_fallthru
          _
      $region56: #{_lambda_.1} parent=5 // pred_fallthru
        _
      %p2800 = scmp.le.s32.totalorder 2, %s24
      // Predicated region
      $region89: #{_lambda_.1} parent=5 // pred_check
        %p2801 = pneg %p2800
      $region90: #{_lambda_.1} parent=5 // pred_check_branch
        %2803 = sbr.rel (%p2801) target = $region92
      $region91: #{_lambda_.1} parent=5 // pred_region
        %s2804 = ssub.s32 %s24, 2
        // Predicated region
        $region93: #{_lambda_.1} parent=91 // pred_check
          %p2805 = pneg %p247
        $region94: #{_lambda_.1} parent=91 // pred_check_branch
          %2807 = sbr.rel (%p2805) target = $region96
        $region95: #{_lambda_.1} parent=91 // pred_region
          %s2808 = sand.u32 %s232, 1
          %s2809 = scalar_lea.sflag [#allocation4], %s2808
          %s2810 = sand.u32 %s232, 1
          %s2811 = smul.addr %s2810, 128
          %s2812 = scalar_lea.vmem [#allocation14], %s2811
          %2813 = dma.done %s2809, 2048
        $region96: #{_lambda_.1} parent=91 // pred_fallthru
          _
      $region92: #{_lambda_.1} parent=5 // pred_fallthru
        _
    $region6: #{_lambda_.1} parent=1 // loop_footer
      %s28 = sadd.s32 1, %s24
    $region7: #{_lambda_.1} parent=1 // loop_footer_branch
      %23 = sbr.rel target = $region3
    $region8: #{_lambda_.1} parent=1 // loop_exit
      _
    %2814 = vsyncpa [#allocation3], 1
    %s2815 = scalar_lea.sflag [#allocation3], 1
    %2816 = vsyncpa %s2815, 1
    %2817 = vsyncpa [#allocation6], 1
    %2818 = vsyncpa [#allocation9], 1
    %2819 = vsyncpa [#allocation12], 1
    %2820 = vsyncpa [#allocation4], 1
    %s2821 = scalar_lea.sflag [#allocation4], 1
    %2822 = vsyncpa %s2821, 1

</llo_original>
